<compile_context>
chip_gen: v7x
topology: tpu7x:2x2x1
jax: 0.10.0
libtpu: 0.0.40
codegen_flags: <defaults>
</compile_context>

<pallas_src>
import functools

import jax
import jax.numpy as jnp
from jax.experimental import pallas as pl
from jax.experimental.pallas import tpu as pltpu


# ---------------------------------------------------------------------------
# Fused encoder-stack kernel: grid = (B, n_layers), one batch element / step.
# The output block (index constant across the layer axis) is the resident
# activation carrier; per-layer weights are streamed in via layer-indexed
# BlockSpecs.
# ---------------------------------------------------------------------------
def fused_encoder_layer_kernel(
    x0_ref, bias_ref,
    wqkv_ref, bqkv_ref, wo_ref, bo_ref,
    ln1g_ref, ln1b_ref, ln2g_ref, ln2b_ref,
    w1_ref, b1_ref, w2_ref, b2_ref,
    o_ref, attn_sc,
    *, n_heads,
):
    l = pl.program_id(1)

    # Layer 0: seed the resident activation (output block) with the scaled,
    # position-added embeddings.
    @pl.when(l == 0)
    def _():
        o_ref[...] = x0_ref[...]

    x = o_ref[...]                                  # (S, H) f32
    S, H = x.shape
    hd = H // n_heads

    # ---- fused QKV projection (1/sqrt(hd) pre-folded into the Q columns) ---
    qkv = jnp.dot(x.astype(jnp.bfloat16), wqkv_ref[...],
                  preferred_element_type=jnp.float32) + bqkv_ref[...]
    qkv = qkv.astype(jnp.bfloat16)                  # (S, 3H)

    bias = bias_ref[...]                            # (1, S) additive key bias

    # ---- per-head attention; head outputs land directly in bf16 scratch ----
    # NOTE: if every key of a batch element is masked, the softmax denominator
    # underflows (PyTorch degenerates to ~uniform); not guarded here.
    for h in range(n_heads):                        # static, small n_heads
        qh = qkv[:, h * hd:(h + 1) * hd]
        kh = qkv[:, H + h * hd:H + (h + 1) * hd]
        vh = qkv[:, 2 * H + h * hd:2 * H + (h + 1) * hd]
        # Q @ K^T via dimension numbers (contract feature dim of both; no .T).
        e = jax.lax.dot_general(
            qh, kh, (((1,), (1,)), ((), ())),
            preferred_element_type=jnp.float32) + bias          # (S, S) f32
        m = jnp.max(e, axis=-1, keepdims=True)
        p = jnp.exp(e - m)
        inv = pl.reciprocal(jnp.sum(p, axis=-1, keepdims=True), approx=True)
        p_bf = (p * inv).astype(jnp.bfloat16)
        head = jnp.dot(p_bf, vh, preferred_element_type=jnp.float32)
        attn_sc[:, h * hd:(h + 1) * hd] = head.astype(jnp.bfloat16)

    attn = jnp.dot(attn_sc[...], wo_ref[...],
                   preferred_element_type=jnp.float32) + bo_ref[...]

    # ---- residual + LayerNorm 1 (single pass, f32) --------------------------
    x1 = x + attn
    mu1 = jnp.mean(x1, axis=-1, keepdims=True)
    var1 = jnp.mean(x1 * x1, axis=-1, keepdims=True) - mu1 * mu1
    x1n = (x1 - mu1) * jax.lax.rsqrt(var1 + 1e-5) * ln1g_ref[...] + ln1b_ref[...]

    # ---- position-wise feed-forward -----------------------------------------
    h1 = jnp.dot(x1n.astype(jnp.bfloat16), w1_ref[...],
                 preferred_element_type=jnp.float32) + b1_ref[...]
    h1 = jnp.maximum(h1, 0.0)
    ff = jnp.dot(h1.astype(jnp.bfloat16), w2_ref[...],
                 preferred_element_type=jnp.float32) + b2_ref[...]

    # ---- residual + LayerNorm 2 (single pass, f32) --------------------------
    x2 = x1n + ff
    mu2 = jnp.mean(x2, axis=-1, keepdims=True)
    var2 = jnp.mean(x2 * x2, axis=-1, keepdims=True) - mu2 * mu2
    y = (x2 - mu2) * jax.lax.rsqrt(var2 + 1e-5) * ln2g_ref[...] + ln2b_ref[...]

    # Keep the activation resident for the next layer (written back to HBM
    # automatically when the batch block index changes / grid ends).
    o_ref[...] = y


# ---------------------------------------------------------------------------
# Parameter init (fp32, per-layer, PyTorch-like) and fused packing.
# ---------------------------------------------------------------------------
def init_params(key, input_dim, mc_dim, hid_dim, n_layers, pf_dim, max_len, max_conn):
    keys = jax.random.split(key, 5 + n_layers)
    p = {
        "mc_emb": jax.random.normal(keys[0], (mc_dim, hid_dim), jnp.float32) * 0.02,
        "num_emb": jax.random.normal(keys[1], (max_conn, hid_dim), jnp.float32) * 0.02,
        "vocab_emb": jax.random.normal(keys[2], (input_dim, hid_dim), jnp.float32) * 0.02,
        "pos_emb": jax.random.normal(keys[3], (max_len, hid_dim), jnp.float32) * 0.02,
        "layers": [],
    }
    for li in range(n_layers):
        lk = jax.random.split(keys[5 + li], 6)
        layer = {
            "wq": jax.random.normal(lk[0], (hid_dim, hid_dim), jnp.float32) * 0.05,
            "wk": jax.random.normal(lk[1], (hid_dim, hid_dim), jnp.float32) * 0.05,
            "wv": jax.random.normal(lk[2], (hid_dim, hid_dim), jnp.float32) * 0.05,
            "wo": jax.random.normal(lk[3], (hid_dim, hid_dim), jnp.float32) * 0.05,
            "bq": jnp.zeros((1, hid_dim), jnp.float32),
            "bk": jnp.zeros((1, hid_dim), jnp.float32),
            "bv": jnp.zeros((1, hid_dim), jnp.float32),
            "bo": jnp.zeros((1, hid_dim), jnp.float32),
            "ln1_g": jnp.ones((1, hid_dim), jnp.float32),
            "ln1_b": jnp.zeros((1, hid_dim), jnp.float32),
            "ln2_g": jnp.ones((1, hid_dim), jnp.float32),
            "ln2_b": jnp.zeros((1, hid_dim), jnp.float32),
            "w1": jax.random.normal(lk[4], (hid_dim, pf_dim), jnp.float32) * 0.05,
            "b1": jnp.zeros((1, pf_dim), jnp.float32),
            "w2": jax.random.normal(lk[5], (pf_dim, hid_dim), jnp.float32) * 0.05,
            "b2": jnp.zeros((1, hid_dim), jnp.float32),
        }
        p["layers"].append(layer)
    return p


def prepare_fused_params(params, n_heads):
    """One-time packing: stack layers into [L, ...] arrays, fuse QKV, fold the
    1/sqrt(head_dim) attention scale into the Q columns, cast matmul weights
    to bf16 (MXU-native); biases / LN params stay fp32."""
    st = lambda k: jnp.stack([lp[k] for lp in params["layers"]])   # (L, ...)
    H = params["layers"][0]["wq"].shape[0]
    inv_scale = 1.0 / float(H // n_heads) ** 0.5
    wq = st("wq") * inv_scale
    bq = st("bq") * inv_scale
    return {
        "mc_emb": params["mc_emb"], "num_emb": params["num_emb"],
        "vocab_emb": params["vocab_emb"], "pos_emb": params["pos_emb"],
        "wqkv": jnp.concatenate([wq, st("wk"), st("wv")], axis=-1).astype(jnp.bfloat16),
        "bqkv": jnp.concatenate([bq, st("bk"), st("bv")], axis=-1),
        "wo": st("wo").astype(jnp.bfloat16), "bo": st("bo"),
        "ln1_g": st("ln1_g"), "ln1_b": st("ln1_b"),
        "ln2_g": st("ln2_g"), "ln2_b": st("ln2_b"),
        "w1": st("w1").astype(jnp.bfloat16), "b1": st("b1"),
        "w2": st("w2").astype(jnp.bfloat16), "b2": st("b2"),
    }


# ---------------------------------------------------------------------------
# Full Encoder forward (embedding glue in plain JAX + one fused pallas_call)
# ---------------------------------------------------------------------------
def encoder_forward(fused, src, src_mask, hid_dim, n_heads):
    # src: [B, src_len] int32; src_mask: [B, 1, 1, src_len]
    B, S = src.shape
    H = hid_dim
    L = fused["wqkv"].shape[0]
    P = fused["w1"].shape[-1]

    # Embedding gathers + scale + positional add (tiny glue, plain JAX).
    mc = jnp.take(fused["mc_emb"], src[:, 0], axis=0)[:, None, :]       # (B,1,H)
    num = jnp.take(fused["num_emb"], src[:, 1], axis=0)[:, None, :]     # (B,1,H)
    voc = jnp.take(fused["vocab_emb"], src[:, 2:], axis=0)              # (B,S-2,H)
    emb = jnp.concatenate([mc, num, voc], axis=1)                       # (B,S,H)
    x0 = (emb * float(H) ** 0.5 + fused["pos_emb"][:S][None]).astype(jnp.float32)

    # Per-batch additive key-padding bias (0 where kept, -1e10 where masked);
    # matches masked_fill(mask == 0, -1e10).  Only (B, 1, S) — no (T, T) bias.
    keep = (src_mask.reshape(B, S) != 0)
    bias = jnp.where(keep, 0.0, -1e10).astype(jnp.float32).reshape(B, 1, S)

    batch_block = lambda shape: pl.BlockSpec(
        (None,) + shape, lambda b, l: (b,) + (0,) * len(shape))
    layer_block = lambda shape: pl.BlockSpec(
        (None,) + shape, lambda b, l: (l,) + (0,) * len(shape))

    in_specs = [
        batch_block((S, H)),                              # x0
        batch_block((1, S)),                              # key-padding bias
        layer_block((H, 3 * H)), layer_block((1, 3 * H)), # Wqkv, bqkv
        layer_block((H, H)), layer_block((1, H)),         # Wo, bo
        layer_block((1, H)), layer_block((1, H)),         # ln1 g, b
        layer_block((1, H)), layer_block((1, H)),         # ln2 g, b
        layer_block((H, P)), layer_block((1, P)),         # W1, b1
        layer_block((P, H)), layer_block((1, H)),         # W2, b2
    ]

    args = (x0, bias, fused["wqkv"], fused["bqkv"], fused["wo"], fused["bo"],
            fused["ln1_g"], fused["ln1_b"], fused["ln2_g"], fused["ln2_b"],
            fused["w1"], fused["b1"], fused["w2"], fused["b2"])

    hd = H // n_heads
    flops = B * L * (2 * S * H * 3 * H            # QKV projection
                     + n_heads * 4 * S * S * hd   # QK^T and P@V (per batch!)
                     + 2 * S * H * H              # output projection
                     + 4 * S * H * P)             # FFN
    transcendentals = B * L * (n_heads * S * S + 4 * S)
    bytes_accessed = sum(int(a.size) * a.dtype.itemsize for a in args) + B * S * H * 4

    # VMEM budget: double-buffered per-layer weights + resident x0 / output
    # blocks + in-body intermediates, with 2x headroom; clamped to v7x 64 MiB.
    wbytes = int(sum(int(a.size) * a.dtype.itemsize for a in args[2:])) // L
    inter = (S * (3 * H + P + 4 * H) + 3 * n_heads * S * S) * 4
    vmem_limit = int(min(64 << 20,
                         max(32 << 20, 2 * (2 * wbytes + 6 * S * H * 4 + inter))))

    out = pl.pallas_call(
        functools.partial(fused_encoder_layer_kernel, n_heads=n_heads),
        out_shape=jax.ShapeDtypeStruct((B, S, H), jnp.float32),
        grid=(B, L),
        in_specs=in_specs,
        out_specs=pl.BlockSpec((None, S, H), lambda b, l: (b, 0, 0)),
        scratch_shapes=[pltpu.VMEM((S, H), jnp.bfloat16)],   # per-head attn out
        compiler_params=pltpu.CompilerParams(
            dimension_semantics=("parallel", "arbitrary"),
            vmem_limit_bytes=vmem_limit),
        cost_estimate=pl.CostEstimate(
            flops=flops, transcendentals=transcendentals,
            bytes_accessed=bytes_accessed),
    )(*args)
    return out                                            # (B, S, H)


# ---------------------------------------------------------------------------
# Pure-JAX fp32 reference (mirrors PyTorch forward semantics) for validation
# ---------------------------------------------------------------------------
def encoder_forward_ref(params, src, src_mask, hid_dim, n_heads):
    B, S = src.shape
    H = hid_dim
    hd = H // n_heads
    mc = jnp.take(params["mc_emb"], src[:, 0], axis=0)[:, None, :]
    num = jnp.take(params["num_emb"], src[:, 1], axis=0)[:, None, :]
    voc = jnp.take(params["vocab_emb"], src[:, 2:], axis=0)
    x = jnp.concatenate([mc, num, voc], axis=1) * float(H) ** 0.5 + params["pos_emb"][:S][None]
    mask = src_mask.reshape(B, 1, 1, S).astype(jnp.float32)
    for p in params["layers"]:
        q = x @ p["wq"] + p["bq"]
        k = x @ p["wk"] + p["bk"]
        v = x @ p["wv"] + p["bv"]
        qh = q.reshape(B, S, n_heads, hd).transpose(0, 2, 1, 3)
        kh = k.reshape(B, S, n_heads, hd).transpose(0, 2, 1, 3)
        vh = v.reshape(B, S, n_heads, hd).transpose(0, 2, 1, 3)
        energy = jnp.einsum("bhqd,bhkd->bhqk", qh, kh) / float(hd) ** 0.5
        energy = jnp.where(mask == 0.0, -1e10, energy)
        attn = jax.nn.softmax(energy, axis=-1)
        out = jnp.einsum("bhqk,bhkd->bhqd", attn, vh).transpose(0, 2, 1, 3).reshape(B, S, H)
        out = out @ p["wo"] + p["bo"]
        x1 = x + out
        mu = x1.mean(-1, keepdims=True)
        var = ((x1 - mu) ** 2).mean(-1, keepdims=True)
        x1n = (x1 - mu) / jnp.sqrt(var + 1e-5) * p["ln1_g"] + p["ln1_b"]
        ff = jnp.maximum(x1n @ p["w1"] + p["b1"], 0.0) @ p["w2"] + p["b2"]
        x2 = x1n + ff
        mu2 = x2.mean(-1, keepdims=True)
        var2 = ((x2 - mu2) ** 2).mean(-1, keepdims=True)
        x = (x2 - mu2) / jnp.sqrt(var2 + 1e-5) * p["ln2_g"] + p["ln2_b"]
    return x


if __name__ == "__main__":
    # Small, module-consistent shapes.
    input_dim, mc_dim, max_conn = 50, 10, 10
    hid_dim, n_layers, n_heads, pf_dim = 32, 2, 4, 64
    max_len = 16
    B, src_len = 2, 8

    key = jax.random.PRNGKey(0)
    kp, ks, km = jax.random.split(key, 3)
    params = init_params(kp, input_dim, mc_dim, hid_dim, n_layers, pf_dim, max_len, max_conn)
    fused = prepare_fused_params(params, n_heads)

    # src tokens: col0 -> mc vocab, col1 -> connection count, rest -> vocab
    k0, k1, k2 = jax.random.split(ks, 3)
    src = jnp.concatenate(
        [
            jax.random.randint(k0, (B, 1), 0, mc_dim),
            jax.random.randint(k1, (B, 1), 0, max_conn),
            jax.random.randint(k2, (B, src_len - 2), 0, input_dim),
        ],
        axis=1,
    ).astype(jnp.int32)                                           # [B, src_len]

    # src_mask: [B, 1, 1, src_len] — mask out the last 2 positions of batch 1.
    src_mask = jnp.ones((B, 1, 1, src_len), jnp.float32)
    src_mask = src_mask.at[1, :, :, -2:].set(0.0)

    fwd = jax.jit(encoder_forward, static_argnames=("hid_dim", "n_heads"))
    out = fwd(fused, src, src_mask, hid_dim=hid_dim, n_heads=n_heads)
    out = jax.block_until_ready(out)

    ref = encoder_forward_ref(params, src, src_mask, hid_dim, n_heads)
    assert out.shape == (B, src_len, hid_dim)
    max_err = float(jnp.max(jnp.abs(out - ref)))
    # bf16 MXU operands + approx reciprocal -> slightly looser tolerance vs fp32 ref.
    assert jnp.allclose(out, ref, atol=5e-2, rtol=5e-2), max_err

    print("KERNEL_OK")
</pallas_src>

<mosaic_0001>
module attributes {stable_mosaic.version = 11 : i64} {
  func.func @fused_encoder_layer_kernel(%arg0: i32, %arg1: i32, %arg2: memref<1x8x32xf32, #tpu.memory_space<vmem>>, %arg3: memref<1x1x8xf32, #tpu.memory_space<vmem>>, %arg4: memref<1x32x96xbf16, #tpu.memory_space<vmem>>, %arg5: memref<1x1x96xf32, #tpu.memory_space<vmem>>, %arg6: memref<1x32x32xbf16, #tpu.memory_space<vmem>>, %arg7: memref<1x1x32xf32, #tpu.memory_space<vmem>>, %arg8: memref<1x1x32xf32, #tpu.memory_space<vmem>>, %arg9: memref<1x1x32xf32, #tpu.memory_space<vmem>>, %arg10: memref<1x1x32xf32, #tpu.memory_space<vmem>>, %arg11: memref<1x1x32xf32, #tpu.memory_space<vmem>>, %arg12: memref<1x32x64xbf16, #tpu.memory_space<vmem>>, %arg13: memref<1x1x64xf32, #tpu.memory_space<vmem>>, %arg14: memref<1x64x32xbf16, #tpu.memory_space<vmem>>, %arg15: memref<1x1x32xf32, #tpu.memory_space<vmem>>, %arg16: memref<1x8x32xf32, #tpu.memory_space<vmem>>, %arg17: memref<8x32xbf16, #tpu.memory_space<vmem>>) attributes {dimension_semantics = [#tpu.dimension_semantics<parallel>, #tpu.dimension_semantics<arbitrary>], iteration_bounds = array<i64: 2, 2>, scalar_prefetch = 0 : i64, scratch_operands = 1 : i64, tpu.core_type = #tpu.core_type<tc>, window_params = [{transform_indices = @transform_0, window_bounds = array<i64: 1, 8, 32>}, {transform_indices = @transform_1, window_bounds = array<i64: 1, 1, 8>}, {transform_indices = @transform_2, window_bounds = array<i64: 1, 32, 96>}, {transform_indices = @transform_3, window_bounds = array<i64: 1, 1, 96>}, {transform_indices = @transform_4, window_bounds = array<i64: 1, 32, 32>}, {transform_indices = @transform_5, window_bounds = array<i64: 1, 1, 32>}, {transform_indices = @transform_6, window_bounds = array<i64: 1, 1, 32>}, {transform_indices = @transform_7, window_bounds = array<i64: 1, 1, 32>}, {transform_indices = @transform_8, window_bounds = array<i64: 1, 1, 32>}, {transform_indices = @transform_9, window_bounds = array<i64: 1, 1, 32>}, {transform_indices = @transform_10, window_bounds = array<i64: 1, 32, 64>}, {transform_indices = @transform_11, window_bounds = array<i64: 1, 1, 64>}, {transform_indices = @transform_12, window_bounds = array<i64: 1, 64, 32>}, {transform_indices = @transform_13, window_bounds = array<i64: 1, 1, 32>}, {transform_indices = @transform_14, window_bounds = array<i64: 1, 8, 32>}]} {
    %c0_i32 = arith.constant 0 : i32
    %0 = arith.cmpi eq, %arg1, %c0_i32 : i32
    %1 = arith.extui %0 : i1 to i32
    %c0_i32_0 = arith.constant 0 : i32
    %2 = arith.cmpi ne, %1, %c0_i32_0 : i32
    scf.if %2 {
      %c0_82 = arith.constant 0 : index
      %c0_83 = arith.constant 0 : index
      %c0_84 = arith.constant 0 : index
      %179 = vector.load %arg2[%c0_82, %c0_83, %c0_84] : memref<1x8x32xf32, #tpu.memory_space<vmem>>, vector<1x8x32xf32>
      %180 = vector.shape_cast %179 : vector<1x8x32xf32> to vector<8x32xf32>
      %c0_85 = arith.constant 0 : index
      %c0_86 = arith.constant 0 : index
      %c0_87 = arith.constant 0 : index
      %181 = vector.load %arg16[%c0_85, %c0_86, %c0_87] : memref<1x8x32xf32, #tpu.memory_space<vmem>>, vector<1x8x32xf32>
      %182 = vector.shape_cast %181 : vector<1x8x32xf32> to vector<8x32xf32>
      %183 = vector.shape_cast %180 : vector<8x32xf32> to vector<1x8x32xf32>
      tpu.vector_store %arg16[%c0_85, %c0_86, %c0_87], %183 {strides = array<i32>} : memref<1x8x32xf32, #tpu.memory_space<vmem>>, vector<1x8x32xf32>,
    } else {
    }
    %c0 = arith.constant 0 : index
    %c0_1 = arith.constant 0 : index
    %c0_2 = arith.constant 0 : index
    %3 = vector.load %arg16[%c0, %c0_1, %c0_2] : memref<1x8x32xf32, #tpu.memory_space<vmem>>, vector<1x8x32xf32>
    %4 = vector.shape_cast %3 : vector<1x8x32xf32> to vector<8x32xf32>
    %5 = arith.truncf %4 : vector<8x32xf32> to vector<8x32xbf16>
    %c0_3 = arith.constant 0 : index
    %c0_4 = arith.constant 0 : index
    %c0_5 = arith.constant 0 : index
    %6 = vector.load %arg4[%c0_3, %c0_4, %c0_5] : memref<1x32x96xbf16, #tpu.memory_space<vmem>>, vector<1x32x96xbf16>
    %7 = vector.shape_cast %6 : vector<1x32x96xbf16> to vector<32x96xbf16>
    %cst = arith.constant dense<0.000000e+00> : vector<8x96xf32>
    %8 = tpu.matmul %5, %7, %cst {dimension_numbers = #tpu.dot_dimension_numbers<[1], [0], [0], [1], [0, 0, 1, 1], [], []>} : vector<8x32xbf16>, vector<32x96xbf16>, vector<8x96xf32> -> vector<8x96xf32>
    %c0_6 = arith.constant 0 : index
    %c0_7 = arith.constant 0 : index
    %c0_8 = arith.constant 0 : index
    %9 = vector.load %arg5[%c0_6, %c0_7, %c0_8] : memref<1x1x96xf32, #tpu.memory_space<vmem>>, vector<1x1x96xf32>
    %10 = vector.shape_cast %9 : vector<1x1x96xf32> to vector<1x96xf32>
    %11 = vector.broadcast %10 : vector<1x96xf32> to vector<8x96xf32>
    %12 = arith.addf %8, %11 : vector<8x96xf32>
    %13 = arith.truncf %12 : vector<8x96xf32> to vector<8x96xbf16>
    %c0_9 = arith.constant 0 : index
    %c0_10 = arith.constant 0 : index
    %c0_11 = arith.constant 0 : index
    %14 = vector.load %arg3[%c0_9, %c0_10, %c0_11] : memref<1x1x8xf32, #tpu.memory_space<vmem>>, vector<1x1x8xf32>
    %15 = vector.shape_cast %14 : vector<1x1x8xf32> to vector<1x8xf32>
    %16 = vector.extract_strided_slice %13 {offsets = [0, 0], sizes = [8, 8], strides = [1, 1]} : vector<8x96xbf16> to vector<8x8xbf16>
    %17 = vector.extract_strided_slice %13 {offsets = [0, 32], sizes = [8, 8], strides = [1, 1]} : vector<8x96xbf16> to vector<8x8xbf16>
    %18 = vector.extract_strided_slice %13 {offsets = [0, 64], sizes = [8, 8], strides = [1, 1]} : vector<8x96xbf16> to vector<8x8xbf16>
    %cst_12 = arith.constant dense<0.000000e+00> : vector<8x8xf32>
    %19 = tpu.matmul %16, %17, %cst_12 {dimension_numbers = #tpu.dot_dimension_numbers<[1], [1], [0], [0], [0, 0, 1, 0], [], []>} : vector<8x8xbf16>, vector<8x8xbf16>, vector<8x8xf32> -> vector<8x8xf32>
    %20 = vector.broadcast %15 : vector<1x8xf32> to vector<8x8xf32>
    %21 = arith.addf %19, %20 : vector<8x8xf32>
    %cst_13 = arith.constant dense<0xFF800000> : vector<8xf32>
    %22 = vector.multi_reduction <maximumf>, %21, %cst_13 [1] : vector<8x8xf32> to vector<8xf32>
    %23 = vector.shape_cast %22 : vector<8xf32> to vector<8x1xf32>
    %24 = vector.broadcast %23 : vector<8x1xf32> to vector<8x8xf32>
    %25 = arith.subf %21, %24 : vector<8x8xf32>
    %26 = math.exp %25 : vector<8x8xf32>
    %cst_14 = arith.constant dense<0.000000e+00> : vector<8xf32>
    %27 = vector.multi_reduction <add>, %26, %cst_14 [1] : vector<8x8xf32> to vector<8xf32>
    %28 = vector.shape_cast %27 : vector<8xf32> to vector<8x1xf32>
    %29 = tpu.reciprocal %28 {approx = true} : vector<8x1xf32> -> vector<8x1xf32>
    %30 = vector.broadcast %29 : vector<8x1xf32> to vector<8x8xf32>
    %31 = arith.mulf %26, %30 : vector<8x8xf32>
    %32 = arith.truncf %31 : vector<8x8xf32> to vector<8x8xbf16>
    %cst_15 = arith.constant dense<0.000000e+00> : vector<8x8xf32>
    %33 = tpu.matmul %32, %18, %cst_15 {dimension_numbers = #tpu.dot_dimension_numbers<[1], [0], [0], [1], [0, 0, 1, 1], [], []>} : vector<8x8xbf16>, vector<8x8xbf16>, vector<8x8xf32> -> vector<8x8xf32>
    %34 = arith.truncf %33 : vector<8x8xf32> to vector<8x8xbf16>
    %c0_16 = arith.constant 0 : index
    %c0_17 = arith.constant 0 : index
    %35 = vector.load %arg17[%c0_16, %c0_17] : memref<8x32xbf16, #tpu.memory_space<vmem>>, vector<8x8xbf16>
    tpu.vector_store %arg17[%c0_16, %c0_17], %34 {strides = array<i32>} : memref<8x32xbf16, #tpu.memory_space<vmem>>, vector<8x8xbf16>,
    %36 = vector.extract_strided_slice %13 {offsets = [0, 8], sizes = [8, 8], strides = [1, 1]} : vector<8x96xbf16> to vector<8x8xbf16>
    %37 = vector.extract_strided_slice %13 {offsets = [0, 40], sizes = [8, 8], strides = [1, 1]} : vector<8x96xbf16> to vector<8x8xbf16>
    %38 = vector.extract_strided_slice %13 {offsets = [0, 72], sizes = [8, 8], strides = [1, 1]} : vector<8x96xbf16> to vector<8x8xbf16>
    %cst_18 = arith.constant dense<0.000000e+00> : vector<8x8xf32>
    %39 = tpu.matmul %36, %37, %cst_18 {dimension_numbers = #tpu.dot_dimension_numbers<[1], [1], [0], [0], [0, 0, 1, 0], [], []>} : vector<8x8xbf16>, vector<8x8xbf16>, vector<8x8xf32> -> vector<8x8xf32>
    %40 = vector.broadcast %15 : vector<1x8xf32> to vector<8x8xf32>
    %41 = arith.addf %39, %40 : vector<8x8xf32>
    %cst_19 = arith.constant dense<0xFF800000> : vector<8xf32>
    %42 = vector.multi_reduction <maximumf>, %41, %cst_19 [1] : vector<8x8xf32> to vector<8xf32>
    %43 = vector.shape_cast %42 : vector<8xf32> to vector<8x1xf32>
    %44 = vector.broadcast %43 : vector<8x1xf32> to vector<8x8xf32>
    %45 = arith.subf %41, %44 : vector<8x8xf32>
    %46 = math.exp %45 : vector<8x8xf32>
    %cst_20 = arith.constant dense<0.000000e+00> : vector<8xf32>
    %47 = vector.multi_reduction <add>, %46, %cst_20 [1] : vector<8x8xf32> to vector<8xf32>
    %48 = vector.shape_cast %47 : vector<8xf32> to vector<8x1xf32>
    %49 = tpu.reciprocal %48 {approx = true} : vector<8x1xf32> -> vector<8x1xf32>
    %50 = vector.broadcast %49 : vector<8x1xf32> to vector<8x8xf32>
    %51 = arith.mulf %46, %50 : vector<8x8xf32>
    %52 = arith.truncf %51 : vector<8x8xf32> to vector<8x8xbf16>
    %cst_21 = arith.constant dense<0.000000e+00> : vector<8x8xf32>
    %53 = tpu.matmul %52, %38, %cst_21 {dimension_numbers = #tpu.dot_dimension_numbers<[1], [0], [0], [1], [0, 0, 1, 1], [], []>} : vector<8x8xbf16>, vector<8x8xbf16>, vector<8x8xf32> -> vector<8x8xf32>
    %54 = arith.truncf %53 : vector<8x8xf32> to vector<8x8xbf16>
    %c0_22 = arith.constant 0 : index
    %c8 = arith.constant 8 : index
    %55 = vector.load %arg17[%c0_22, %c8] : memref<8x32xbf16, #tpu.memory_space<vmem>>, vector<8x8xbf16>
    tpu.vector_store %arg17[%c0_22, %c8], %54 {strides = array<i32>} : memref<8x32xbf16, #tpu.memory_space<vmem>>, vector<8x8xbf16>,
    %56 = vector.extract_strided_slice %13 {offsets = [0, 16], sizes = [8, 8], strides = [1, 1]} : vector<8x96xbf16> to vector<8x8xbf16>
    %57 = vector.extract_strided_slice %13 {offsets = [0, 48], sizes = [8, 8], strides = [1, 1]} : vector<8x96xbf16> to vector<8x8xbf16>
    %58 = vector.extract_strided_slice %13 {offsets = [0, 80], sizes = [8, 8], strides = [1, 1]} : vector<8x96xbf16> to vector<8x8xbf16>
    %cst_23 = arith.constant dense<0.000000e+00> : vector<8x8xf32>
    %59 = tpu.matmul %56, %57, %cst_23 {dimension_numbers = #tpu.dot_dimension_numbers<[1], [1], [0], [0], [0, 0, 1, 0], [], []>} : vector<8x8xbf16>, vector<8x8xbf16>, vector<8x8xf32> -> vector<8x8xf32>
    %60 = vector.broadcast %15 : vector<1x8xf32> to vector<8x8xf32>
    %61 = arith.addf %59, %60 : vector<8x8xf32>
    %cst_24 = arith.constant dense<0xFF800000> : vector<8xf32>
    %62 = vector.multi_reduction <maximumf>, %61, %cst_24 [1] : vector<8x8xf32> to vector<8xf32>
    %63 = vector.shape_cast %62 : vector<8xf32> to vector<8x1xf32>
    %64 = vector.broadcast %63 : vector<8x1xf32> to vector<8x8xf32>
    %65 = arith.subf %61, %64 : vector<8x8xf32>
    %66 = math.exp %65 : vector<8x8xf32>
    %cst_25 = arith.constant dense<0.000000e+00> : vector<8xf32>
    %67 = vector.multi_reduction <add>, %66, %cst_25 [1] : vector<8x8xf32> to vector<8xf32>
    %68 = vector.shape_cast %67 : vector<8xf32> to vector<8x1xf32>
    %69 = tpu.reciprocal %68 {approx = true} : vector<8x1xf32> -> vector<8x1xf32>
    %70 = vector.broadcast %69 : vector<8x1xf32> to vector<8x8xf32>
    %71 = arith.mulf %66, %70 : vector<8x8xf32>
    %72 = arith.truncf %71 : vector<8x8xf32> to vector<8x8xbf16>
    %cst_26 = arith.constant dense<0.000000e+00> : vector<8x8xf32>
    %73 = tpu.matmul %72, %58, %cst_26 {dimension_numbers = #tpu.dot_dimension_numbers<[1], [0], [0], [1], [0, 0, 1, 1], [], []>} : vector<8x8xbf16>, vector<8x8xbf16>, vector<8x8xf32> -> vector<8x8xf32>
    %74 = arith.truncf %73 : vector<8x8xf32> to vector<8x8xbf16>
    %c0_27 = arith.constant 0 : index
    %c16 = arith.constant 16 : index
    %75 = vector.load %arg17[%c0_27, %c16] : memref<8x32xbf16, #tpu.memory_space<vmem>>, vector<8x8xbf16>
    tpu.vector_store %arg17[%c0_27, %c16], %74 {strides = array<i32>} : memref<8x32xbf16, #tpu.memory_space<vmem>>, vector<8x8xbf16>,
    %76 = vector.extract_strided_slice %13 {offsets = [0, 24], sizes = [8, 8], strides = [1, 1]} : vector<8x96xbf16> to vector<8x8xbf16>
    %77 = vector.extract_strided_slice %13 {offsets = [0, 56], sizes = [8, 8], strides = [1, 1]} : vector<8x96xbf16> to vector<8x8xbf16>
    %78 = vector.extract_strided_slice %13 {offsets = [0, 88], sizes = [8, 8], strides = [1, 1]} : vector<8x96xbf16> to vector<8x8xbf16>
    %cst_28 = arith.constant dense<0.000000e+00> : vector<8x8xf32>
    %79 = tpu.matmul %76, %77, %cst_28 {dimension_numbers = #tpu.dot_dimension_numbers<[1], [1], [0], [0], [0, 0, 1, 0], [], []>} : vector<8x8xbf16>, vector<8x8xbf16>, vector<8x8xf32> -> vector<8x8xf32>
    %80 = vector.broadcast %15 : vector<1x8xf32> to vector<8x8xf32>
    %81 = arith.addf %79, %80 : vector<8x8xf32>
    %cst_29 = arith.constant dense<0xFF800000> : vector<8xf32>
    %82 = vector.multi_reduction <maximumf>, %81, %cst_29 [1] : vector<8x8xf32> to vector<8xf32>
    %83 = vector.shape_cast %82 : vector<8xf32> to vector<8x1xf32>
    %84 = vector.broadcast %83 : vector<8x1xf32> to vector<8x8xf32>
    %85 = arith.subf %81, %84 : vector<8x8xf32>
    %86 = math.exp %85 : vector<8x8xf32>
    %cst_30 = arith.constant dense<0.000000e+00> : vector<8xf32>
    %87 = vector.multi_reduction <add>, %86, %cst_30 [1] : vector<8x8xf32> to vector<8xf32>
    %88 = vector.shape_cast %87 : vector<8xf32> to vector<8x1xf32>
    %89 = tpu.reciprocal %88 {approx = true} : vector<8x1xf32> -> vector<8x1xf32>
    %90 = vector.broadcast %89 : vector<8x1xf32> to vector<8x8xf32>
    %91 = arith.mulf %86, %90 : vector<8x8xf32>
    %92 = arith.truncf %91 : vector<8x8xf32> to vector<8x8xbf16>
    %cst_31 = arith.constant dense<0.000000e+00> : vector<8x8xf32>
    %93 = tpu.matmul %92, %78, %cst_31 {dimension_numbers = #tpu.dot_dimension_numbers<[1], [0], [0], [1], [0, 0, 1, 1], [], []>} : vector<8x8xbf16>, vector<8x8xbf16>, vector<8x8xf32> -> vector<8x8xf32>
    %94 = arith.truncf %93 : vector<8x8xf32> to vector<8x8xbf16>
    %c0_32 = arith.constant 0 : index
    %c24 = arith.constant 24 : index
    %95 = vector.load %arg17[%c0_32, %c24] : memref<8x32xbf16, #tpu.memory_space<vmem>>, vector<8x8xbf16>
    tpu.vector_store %arg17[%c0_32, %c24], %94 {strides = array<i32>} : memref<8x32xbf16, #tpu.memory_space<vmem>>, vector<8x8xbf16>,
    %c0_33 = arith.constant 0 : index
    %c0_34 = arith.constant 0 : index
    %96 = vector.load %arg17[%c0_33, %c0_34] : memref<8x32xbf16, #tpu.memory_space<vmem>>, vector<8x32xbf16>
    %c0_35 = arith.constant 0 : index
    %c0_36 = arith.constant 0 : index
    %c0_37 = arith.constant 0 : index
    %97 = vector.load %arg6[%c0_35, %c0_36, %c0_37] : memref<1x32x32xbf16, #tpu.memory_space<vmem>>, vector<1x32x32xbf16>
    %98 = vector.shape_cast %97 : vector<1x32x32xbf16> to vector<32x32xbf16>
    %cst_38 = arith.constant dense<0.000000e+00> : vector<8x32xf32>
    %99 = tpu.matmul %96, %98, %cst_38 {dimension_numbers = #tpu.dot_dimension_numbers<[1], [0], [0], [1], [0, 0, 1, 1], [], []>} : vector<8x32xbf16>, vector<32x32xbf16>, vector<8x32xf32> -> vector<8x32xf32>
    %c0_39 = arith.constant 0 : index
    %c0_40 = arith.constant 0 : index
    %c0_41 = arith.constant 0 : index
    %100 = vector.load %arg7[%c0_39, %c0_40, %c0_41] : memref<1x1x32xf32, #tpu.memory_space<vmem>>, vector<1x1x32xf32>
    %101 = vector.shape_cast %100 : vector<1x1x32xf32> to vector<1x32xf32>
    %102 = vector.broadcast %101 : vector<1x32xf32> to vector<8x32xf32>
    %103 = arith.addf %99, %102 : vector<8x32xf32>
    %104 = arith.addf %4, %103 : vector<8x32xf32>
    %cst_42 = arith.constant dense<0.000000e+00> : vector<8xf32>
    %105 = vector.multi_reduction <add>, %104, %cst_42 [1] : vector<8x32xf32> to vector<8xf32>
    %106 = vector.shape_cast %105 : vector<8xf32> to vector<8x1xf32>
    %cst_43 = arith.constant 3.200000e+01 : f32
    %107 = vector.broadcast %cst_43 : f32 to vector<8x1xf32>
    %108 = arith.divf %106, %107 : vector<8x1xf32>
    %109 = arith.mulf %104, %104 : vector<8x32xf32>
    %cst_44 = arith.constant dense<0.000000e+00> : vector<8xf32>
    %110 = vector.multi_reduction <add>, %109, %cst_44 [1] : vector<8x32xf32> to vector<8xf32>
    %111 = vector.shape_cast %110 : vector<8xf32> to vector<8x1xf32>
    %cst_45 = arith.constant 3.200000e+01 : f32
    %112 = vector.broadcast %cst_45 : f32 to vector<8x1xf32>
    %113 = arith.divf %111, %112 : vector<8x1xf32>
    %114 = arith.mulf %108, %108 : vector<8x1xf32>
    %115 = arith.subf %113, %114 : vector<8x1xf32>
    %116 = vector.broadcast %108 : vector<8x1xf32> to vector<8x32xf32>
    %117 = arith.subf %104, %116 : vector<8x32xf32>
    %cst_46 = arith.constant 9.99999974E-6 : f32
    %118 = vector.broadcast %cst_46 : f32 to vector<8x1xf32>
    %119 = arith.addf %115, %118 : vector<8x1xf32>
    %120 = math.rsqrt %119 : vector<8x1xf32>
    %121 = vector.broadcast %120 : vector<8x1xf32> to vector<8x32xf32>
    %122 = arith.mulf %117, %121 : vector<8x32xf32>
    %c0_47 = arith.constant 0 : index
    %c0_48 = arith.constant 0 : index
    %c0_49 = arith.constant 0 : index
    %123 = vector.load %arg8[%c0_47, %c0_48, %c0_49] : memref<1x1x32xf32, #tpu.memory_space<vmem>>, vector<1x1x32xf32>
    %124 = vector.shape_cast %123 : vector<1x1x32xf32> to vector<1x32xf32>
    %125 = vector.broadcast %124 : vector<1x32xf32> to vector<8x32xf32>
    %126 = arith.mulf %122, %125 : vector<8x32xf32>
    %c0_50 = arith.constant 0 : index
    %c0_51 = arith.constant 0 : index
    %c0_52 = arith.constant 0 : index
    %127 = vector.load %arg9[%c0_50, %c0_51, %c0_52] : memref<1x1x32xf32, #tpu.memory_space<vmem>>, vector<1x1x32xf32>
    %128 = vector.shape_cast %127 : vector<1x1x32xf32> to vector<1x32xf32>
    %129 = vector.broadcast %128 : vector<1x32xf32> to vector<8x32xf32>
    %130 = arith.addf %126, %129 : vector<8x32xf32>
    %131 = arith.truncf %130 : vector<8x32xf32> to vector<8x32xbf16>
    %c0_53 = arith.constant 0 : index
    %c0_54 = arith.constant 0 : index
    %c0_55 = arith.constant 0 : index
    %132 = vector.load %arg12[%c0_53, %c0_54, %c0_55] : memref<1x32x64xbf16, #tpu.memory_space<vmem>>, vector<1x32x64xbf16>
    %133 = vector.shape_cast %132 : vector<1x32x64xbf16> to vector<32x64xbf16>
    %cst_56 = arith.constant dense<0.000000e+00> : vector<8x64xf32>
    %134 = tpu.matmul %131, %133, %cst_56 {dimension_numbers = #tpu.dot_dimension_numbers<[1], [0], [0], [1], [0, 0, 1, 1], [], []>} : vector<8x32xbf16>, vector<32x64xbf16>, vector<8x64xf32> -> vector<8x64xf32>
    %c0_57 = arith.constant 0 : index
    %c0_58 = arith.constant 0 : index
    %c0_59 = arith.constant 0 : index
    %135 = vector.load %arg13[%c0_57, %c0_58, %c0_59] : memref<1x1x64xf32, #tpu.memory_space<vmem>>, vector<1x1x64xf32>
    %136 = vector.shape_cast %135 : vector<1x1x64xf32> to vector<1x64xf32>
    %137 = vector.broadcast %136 : vector<1x64xf32> to vector<8x64xf32>
    %138 = arith.addf %134, %137 : vector<8x64xf32>
    %cst_60 = arith.constant 0.000000e+00 : f32
    %139 = vector.broadcast %cst_60 : f32 to vector<8x64xf32>
    %140 = arith.maximumf %138, %139 : vector<8x64xf32>
    %141 = arith.truncf %140 : vector<8x64xf32> to vector<8x64xbf16>
    %c0_61 = arith.constant 0 : index
    %c0_62 = arith.constant 0 : index
    %c0_63 = arith.constant 0 : index
    %142 = vector.load %arg14[%c0_61, %c0_62, %c0_63] : memref<1x64x32xbf16, #tpu.memory_space<vmem>>, vector<1x64x32xbf16>
    %143 = vector.shape_cast %142 : vector<1x64x32xbf16> to vector<64x32xbf16>
    %cst_64 = arith.constant dense<0.000000e+00> : vector<8x32xf32>
    %144 = tpu.matmul %141, %143, %cst_64 {dimension_numbers = #tpu.dot_dimension_numbers<[1], [0], [0], [1], [0, 0, 1, 1], [], []>} : vector<8x64xbf16>, vector<64x32xbf16>, vector<8x32xf32> -> vector<8x32xf32>
    %c0_65 = arith.constant 0 : index
    %c0_66 = arith.constant 0 : index
    %c0_67 = arith.constant 0 : index
    %145 = vector.load %arg15[%c0_65, %c0_66, %c0_67] : memref<1x1x32xf32, #tpu.memory_space<vmem>>, vector<1x1x32xf32>
    %146 = vector.shape_cast %145 : vector<1x1x32xf32> to vector<1x32xf32>
    %147 = vector.broadcast %146 : vector<1x32xf32> to vector<8x32xf32>
    %148 = arith.addf %144, %147 : vector<8x32xf32>
    %149 = arith.addf %130, %148 : vector<8x32xf32>
    %cst_68 = arith.constant dense<0.000000e+00> : vector<8xf32>
    %150 = vector.multi_reduction <add>, %149, %cst_68 [1] : vector<8x32xf32> to vector<8xf32>
    %151 = vector.shape_cast %150 : vector<8xf32> to vector<8x1xf32>
    %cst_69 = arith.constant 3.200000e+01 : f32
    %152 = vector.broadcast %cst_69 : f32 to vector<8x1xf32>
    %153 = arith.divf %151, %152 : vector<8x1xf32>
    %154 = arith.mulf %149, %149 : vector<8x32xf32>
    %cst_70 = arith.constant dense<0.000000e+00> : vector<8xf32>
    %155 = vector.multi_reduction <add>, %154, %cst_70 [1] : vector<8x32xf32> to vector<8xf32>
    %156 = vector.shape_cast %155 : vector<8xf32> to vector<8x1xf32>
    %cst_71 = arith.constant 3.200000e+01 : f32
    %157 = vector.broadcast %cst_71 : f32 to vector<8x1xf32>
    %158 = arith.divf %156, %157 : vector<8x1xf32>
    %159 = arith.mulf %153, %153 : vector<8x1xf32>
    %160 = arith.subf %158, %159 : vector<8x1xf32>
    %161 = vector.broadcast %153 : vector<8x1xf32> to vector<8x32xf32>
    %162 = arith.subf %149, %161 : vector<8x32xf32>
    %cst_72 = arith.constant 9.99999974E-6 : f32
    %163 = vector.broadcast %cst_72 : f32 to vector<8x1xf32>
    %164 = arith.addf %160, %163 : vector<8x1xf32>
    %165 = math.rsqrt %164 : vector<8x1xf32>
    %166 = vector.broadcast %165 : vector<8x1xf32> to vector<8x32xf32>
    %167 = arith.mulf %162, %166 : vector<8x32xf32>
    %c0_73 = arith.constant 0 : index
    %c0_74 = arith.constant 0 : index
    %c0_75 = arith.constant 0 : index
    %168 = vector.load %arg10[%c0_73, %c0_74, %c0_75] : memref<1x1x32xf32, #tpu.memory_space<vmem>>, vector<1x1x32xf32>
    %169 = vector.shape_cast %168 : vector<1x1x32xf32> to vector<1x32xf32>
    %170 = vector.broadcast %169 : vector<1x32xf32> to vector<8x32xf32>
    %171 = arith.mulf %167, %170 : vector<8x32xf32>
    %c0_76 = arith.constant 0 : index
    %c0_77 = arith.constant 0 : index
    %c0_78 = arith.constant 0 : index
    %172 = vector.load %arg11[%c0_76, %c0_77, %c0_78] : memref<1x1x32xf32, #tpu.memory_space<vmem>>, vector<1x1x32xf32>
    %173 = vector.shape_cast %172 : vector<1x1x32xf32> to vector<1x32xf32>
    %174 = vector.broadcast %173 : vector<1x32xf32> to vector<8x32xf32>
    %175 = arith.addf %171, %174 : vector<8x32xf32>
    %c0_79 = arith.constant 0 : index
    %c0_80 = arith.constant 0 : index
    %c0_81 = arith.constant 0 : index
    %176 = vector.load %arg16[%c0_79, %c0_80, %c0_81] : memref<1x8x32xf32, #tpu.memory_space<vmem>>, vector<1x8x32xf32>
    %177 = vector.shape_cast %176 : vector<1x8x32xf32> to vector<8x32xf32>
    %178 = vector.shape_cast %175 : vector<8x32xf32> to vector<1x8x32xf32>
    tpu.vector_store %arg16[%c0_79, %c0_80, %c0_81], %178 {strides = array<i32>} : memref<1x8x32xf32, #tpu.memory_space<vmem>>, vector<1x8x32xf32>,
    return
  }
  func.func @transform_0(%arg0: i32, %arg1: i32) -> (i32, i32, i32) {
    %c0_i32 = arith.constant 0 : i32
    %c0_i32_0 = arith.constant 0 : i32
    %c0_i32_1 = arith.constant 0 : i32
    return %arg0, %c0_i32, %c0_i32_0 : i32, i32, i32
  }
  func.func @transform_1(%arg0: i32, %arg1: i32) -> (i32, i32, i32) {
    %c0_i32 = arith.constant 0 : i32
    %c0_i32_0 = arith.constant 0 : i32
    %c0_i32_1 = arith.constant 0 : i32
    return %arg0, %c0_i32, %c0_i32_0 : i32, i32, i32
  }
  func.func @transform_2(%arg0: i32, %arg1: i32) -> (i32, i32, i32) {
    %c0_i32 = arith.constant 0 : i32
    %c0_i32_0 = arith.constant 0 : i32
    %c0_i32_1 = arith.constant 0 : i32
    return %arg1, %c0_i32, %c0_i32_0 : i32, i32, i32
  }
  func.func @transform_3(%arg0: i32, %arg1: i32) -> (i32, i32, i32) {
    %c0_i32 = arith.constant 0 : i32
    %c0_i32_0 = arith.constant 0 : i32
    %c0_i32_1 = arith.constant 0 : i32
    return %arg1, %c0_i32, %c0_i32_0 : i32, i32, i32
  }
  func.func @transform_4(%arg0: i32, %arg1: i32) -> (i32, i32, i32) {
    %c0_i32 = arith.constant 0 : i32
    %c0_i32_0 = arith.constant 0 : i32
    %c0_i32_1 = arith.constant 0 : i32
    return %arg1, %c0_i32, %c0_i32_0 : i32, i32, i32
  }
  func.func @transform_5(%arg0: i32, %arg1: i32) -> (i32, i32, i32) {
    %c0_i32 = arith.constant 0 : i32
    %c0_i32_0 = arith.constant 0 : i32
    %c0_i32_1 = arith.constant 0 : i32
    return %arg1, %c0_i32, %c0_i32_0 : i32, i32, i32
  }
  func.func @transform_6(%arg0: i32, %arg1: i32) -> (i32, i32, i32) {
    %c0_i32 = arith.constant 0 : i32
    %c0_i32_0 = arith.constant 0 : i32
    %c0_i32_1 = arith.constant 0 : i32
    return %arg1, %c0_i32, %c0_i32_0 : i32, i32, i32
  }
  func.func @transform_7(%arg0: i32, %arg1: i32) -> (i32, i32, i32) {
    %c0_i32 = arith.constant 0 : i32
    %c0_i32_0 = arith.constant 0 : i32
    %c0_i32_1 = arith.constant 0 : i32
    return %arg1, %c0_i32, %c0_i32_0 : i32, i32, i32
  }
  func.func @transform_8(%arg0: i32, %arg1: i32) -> (i32, i32, i32) {
    %c0_i32 = arith.constant 0 : i32
    %c0_i32_0 = arith.constant 0 : i32
    %c0_i32_1 = arith.constant 0 : i32
    return %arg1, %c0_i32, %c0_i32_0 : i32, i32, i32
  }
  func.func @transform_9(%arg0: i32, %arg1: i32) -> (i32, i32, i32) {
    %c0_i32 = arith.constant 0 : i32
    %c0_i32_0 = arith.constant 0 : i32
    %c0_i32_1 = arith.constant 0 : i32
    return %arg1, %c0_i32, %c0_i32_0 : i32, i32, i32
  }
  func.func @transform_10(%arg0: i32, %arg1: i32) -> (i32, i32, i32) {
    %c0_i32 = arith.constant 0 : i32
    %c0_i32_0 = arith.constant 0 : i32
    %c0_i32_1 = arith.constant 0 : i32
    return %arg1, %c0_i32, %c0_i32_0 : i32, i32, i32
  }
  func.func @transform_11(%arg0: i32, %arg1: i32) -> (i32, i32, i32) {
    %c0_i32 = arith.constant 0 : i32
    %c0_i32_0 = arith.constant 0 : i32
    %c0_i32_1 = arith.constant 0 : i32
    return %arg1, %c0_i32, %c0_i32_0 : i32, i32, i32
  }
  func.func @transform_12(%arg0: i32, %arg1: i32) -> (i32, i32, i32) {
    %c0_i32 = arith.constant 0 : i32
    %c0_i32_0 = arith.constant 0 : i32
    %c0_i32_1 = arith.constant 0 : i32
    return %arg1, %c0_i32, %c0_i32_0 : i32, i32, i32
  }
  func.func @transform_13(%arg0: i32, %arg1: i32) -> (i32, i32, i32) {
    %c0_i32 = arith.constant 0 : i32
    %c0_i32_0 = arith.constant 0 : i32
    %c0_i32_1 = arith.constant 0 : i32
    return %arg1, %c0_i32, %c0_i32_0 : i32, i32, i32
  }
  func.func @transform_14(%arg0: i32, %arg1: i32) -> (i32, i32, i32) {
    %c0_i32 = arith.constant 0 : i32
    %c0_i32_0 = arith.constant 0 : i32
    %c0_i32_1 = arith.constant 0 : i32
    return %arg0, %c0_i32, %c0_i32_0 : i32, i32, i32
  }
}

</mosaic_0001>

<llo_original>
// kernel: encoder_forward.1
$region0: #{encoder_forward.1}
  #allocation0 [shape = 'u32[]', space=smem, size = 0x4, offset = 0x4, fixed_abs, tag = 'smem constant byte address 0x4 - core index']
  #allocation1 [shape = 'u32[144,128]{1,0:T(1,128)}', space=vmem, size = 0x12000, scoped, tag = 'internal scratch']
  #allocation2 [shape = 'bf16[8,32]{1,0:T(8,128)(2,1)}', space=vmem, size = 0x800, scoped, tag = 'scratch operand']
  %s0 = inlined_call_operand.vmem [shape: f32[2,8,32], index: 0, kind: input, shape index: {}]
  %s1 = inlined_call_operand.vmem [shape: f32[2,1,8], index: 1, kind: input, shape index: {}]
  %s2 = inlined_call_operand.vmem [shape: bf16[2,32,96], index: 2, kind: input, shape index: {}]
  %s3 = inlined_call_operand.vmem [shape: f32[2,1,96], index: 3, kind: input, shape index: {}]
  %s4 = inlined_call_operand.vmem [shape: bf16[2,32,32], index: 4, kind: input, shape index: {}]
  %s5 = inlined_call_operand.vmem [shape: f32[2,1,32], index: 5, kind: input, shape index: {}]
  %s6 = inlined_call_operand.vmem [shape: f32[2,1,32], index: 6, kind: input, shape index: {}]
  %s7 = inlined_call_operand.vmem [shape: f32[2,1,32], index: 7, kind: input, shape index: {}]
  %s8 = inlined_call_operand.vmem [shape: f32[2,1,32], index: 8, kind: input, shape index: {}]
  %s9 = inlined_call_operand.vmem [shape: f32[2,1,32], index: 9, kind: input, shape index: {}]
  %s10 = inlined_call_operand.vmem [shape: bf16[2,32,64], index: 10, kind: input, shape index: {}]
  %s11 = inlined_call_operand.vmem [shape: f32[2,1,64], index: 11, kind: input, shape index: {}]
  %s12 = inlined_call_operand.vmem [shape: bf16[2,64,32], index: 12, kind: input, shape index: {}]
  %s13 = inlined_call_operand.vmem [shape: f32[2,1,32], index: 13, kind: input, shape index: {}]
  %s14 = inlined_call_operand.hbm [shape: f32[2,8,32], index: 14, kind: output, shape index: {}]
  %s15 = sld [smem:[#allocation0]]
  $region93: #{encoder_forward.1} parent=0
    _
  %s17 = ssub.s32 1, %s15
  %s18 = scalar_select 0, %s17, %s15
  $region1: #{encoder_forward.1} parent=0
    #allocation3 [shape = 'u8[8192]{0}', space=vmem, size = 0x2000, scoped, tag = 'output window, operand 0']
    #allocation4 [shape = 's32[2]{0}', space=sflag, size = 0x8, scoped, tag = 'scoped memory for encoder_forward.1']
    %19 = vsyncpa [#allocation4], 0
    %s20 = scalar_lea.sflag [#allocation4], 1
    %21 = vsyncpa %s20, 0
    loop: start=0, step=1, limit=6
    $region2: #{encoder_forward.1} parent=1 // loop_pre_header
      _
    $region3: #{encoder_forward.1} parent=1 // loop_header
      %s23 = sphi 0, %s27
      %p24 = scmp.ge.s32.totalorder %s23, 6
      %s30 = sphi 0, %s42
      %s31 = sphi 0, %s38
      %s32 = sphi 0, %s30
      %s33 = sphi 0, %s31
      %s34 = sphi 0, %s32
      %s35 = sphi 0, %s33
      %s45 = sphi 0, %s47
      %s48 = sphi 0, %s45
      %s49 = sphi 0, %s48
      %s65 = sphi 0, %s49
      %s71 = sphi 0, %s73
      %s74 = sphi 0, %s71
      %s75 = sphi 0, %s74
      %s91 = sphi 0, %s75
      %s97 = sphi 0, %s99
      %s100 = sphi 0, %s97
      %s101 = sphi 0, %s100
      %s117 = sphi 0, %s101
      %s123 = sphi 0, %s125
      %s126 = sphi 0, %s123
      %s127 = sphi 0, %s126
      %s143 = sphi 0, %s127
      %s149 = sphi 0, %s151
      %s152 = sphi 0, %s149
      %s153 = sphi 0, %s152
      %s169 = sphi 0, %s153
      %s175 = sphi 0, %s177
      %s178 = sphi 0, %s175
      %s179 = sphi 0, %s178
      %s195 = sphi 0, %s179
      %s201 = sphi 0, %s203
      %s204 = sphi 0, %s201
      %s205 = sphi 0, %s204
      %s221 = sphi 0, %s205
      %s227 = sphi 0, %s229
      %s230 = sphi 0, %s227
      %s231 = sphi 0, %s230
      %s247 = sphi 0, %s231
      %s253 = sphi 0, %s255
      %s256 = sphi 0, %s253
      %s257 = sphi 0, %s256
      %s273 = sphi 0, %s257
      %s279 = sphi 0, %s281
      %s282 = sphi 0, %s279
      %s283 = sphi 0, %s282
      %s299 = sphi 0, %s283
      %s305 = sphi 0, %s307
      %s308 = sphi 0, %s305
      %s309 = sphi 0, %s308
      %s325 = sphi 0, %s309
      %s331 = sphi 0, %s333
      %s334 = sphi 0, %s331
      %s335 = sphi 0, %s334
      %s351 = sphi 0, %s335
      %s357 = sphi 0, %s359
      %s360 = sphi 0, %s357
      %s361 = sphi 0, %s360
      %s377 = sphi 0, %s361
      %s383 = sphi 0, %s385
      %s386 = sphi 0, %s383
      %s387 = sphi 0, %s386
      %s403 = sphi 0, %s387
      %s409 = sphi 0, %s411
      %s412 = sphi 0, %s409
      %s413 = sphi 0, %s412
      %s429 = sphi 0, %s413
    $region4: #{encoder_forward.1} parent=1 // loop_header_branch
      %26 = sbr.rel (%p24) target = $region8
    $region5: #{encoder_forward.1} parent=1 // loop_body
      %s28 = ssub.s32 %s23, 1
      %s29 = ssub.s32 %s23, 2
      %s36 = sadd.s32 1, %s31
      %p37 = scmp.ge.s32.totalorder %s36, 2
      %s38 = scalar_select %p37, 0, %s36
      %s39 = sadd.s32 1, %s30
      %s40 = scalar_select %p37, %s39, %s30
      %p41 = scmp.ge.s32.totalorder %s40, 2
      %s42 = scalar_select %p41, 0, %s40
      %s43 = ssub.s32 %s30, %s42
      %p44 = scmp.eq.s32.totalorder %s43, 0
      %s46 = sadd.s32 %s45, 1
      %s47 = scalar_select %p44, %s45, %s46
      %p50 = pneg %p44
      %p51 = scmp.eq.s32.totalorder %s23, 3
      %p52 = por %p50, %p51
      %p53 = scmp.ne.s32.totalorder %s45, %s48
      %p54 = scmp.eq.s32.totalorder %s23, 0
      %p55 = por %p53, %p54
      %p56 = scmp.ne.s32.totalorder %s45, %s48
      %p57 = scmp.eq.s32.totalorder %s28, 3
      %p58 = por %p56, %p57
      %p59 = scmp.ne.s32.totalorder %s48, %s49
      %p60 = scmp.eq.s32.totalorder %s28, 0
      %p61 = por %p59, %p60
      %p62 = scmp.ne.s32.totalorder %s48, %s49
      %p63 = scmp.eq.s32.totalorder %s29, 3
      %p64 = por %p62, %p63
      %p66 = scmp.ne.s32.totalorder %s49, %s65
      %p67 = scmp.eq.s32.totalorder %s29, 0
      %p68 = por %p66, %p67
      %s69 = ssub.s32 %s30, %s42
      %p70 = scmp.eq.s32.totalorder %s69, 0
      %s72 = sadd.s32 %s71, 1
      %s73 = scalar_select %p70, %s71, %s72
      %p76 = pneg %p70
      %p77 = scmp.eq.s32.totalorder %s23, 3
      %p78 = por %p76, %p77
      %p79 = scmp.ne.s32.totalorder %s71, %s74
      %p80 = scmp.eq.s32.totalorder %s23, 0
      %p81 = por %p79, %p80
      %p82 = scmp.ne.s32.totalorder %s71, %s74
      %p83 = scmp.eq.s32.totalorder %s28, 3
      %p84 = por %p82, %p83
      %p85 = scmp.ne.s32.totalorder %s74, %s75
      %p86 = scmp.eq.s32.totalorder %s28, 0
      %p87 = por %p85, %p86
      %p88 = scmp.ne.s32.totalorder %s74, %s75
      %p89 = scmp.eq.s32.totalorder %s29, 3
      %p90 = por %p88, %p89
      %p92 = scmp.ne.s32.totalorder %s75, %s91
      %p93 = scmp.eq.s32.totalorder %s29, 0
      %p94 = por %p92, %p93
      %s95 = ssub.s32 %s31, %s38
      %p96 = scmp.eq.s32.totalorder %s95, 0
      %s98 = sadd.s32 %s97, 1
      %s99 = scalar_select %p96, %s97, %s98
      %p102 = pneg %p96
      %p103 = scmp.eq.s32.totalorder %s23, 3
      %p104 = por %p102, %p103
      %p105 = scmp.ne.s32.totalorder %s97, %s100
      %p106 = scmp.eq.s32.totalorder %s23, 0
      %p107 = por %p105, %p106
      %p108 = scmp.ne.s32.totalorder %s97, %s100
      %p109 = scmp.eq.s32.totalorder %s28, 3
      %p110 = por %p108, %p109
      %p111 = scmp.ne.s32.totalorder %s100, %s101
      %p112 = scmp.eq.s32.totalorder %s28, 0
      %p113 = por %p111, %p112
      %p114 = scmp.ne.s32.totalorder %s100, %s101
      %p115 = scmp.eq.s32.totalorder %s29, 3
      %p116 = por %p114, %p115
      %p118 = scmp.ne.s32.totalorder %s101, %s117
      %p119 = scmp.eq.s32.totalorder %s29, 0
      %p120 = por %p118, %p119
      %s121 = ssub.s32 %s31, %s38
      %p122 = scmp.eq.s32.totalorder %s121, 0
      %s124 = sadd.s32 %s123, 1
      %s125 = scalar_select %p122, %s123, %s124
      %p128 = pneg %p122
      %p129 = scmp.eq.s32.totalorder %s23, 3
      %p130 = por %p128, %p129
      %p131 = scmp.ne.s32.totalorder %s123, %s126
      %p132 = scmp.eq.s32.totalorder %s23, 0
      %p133 = por %p131, %p132
      %p134 = scmp.ne.s32.totalorder %s123, %s126
      %p135 = scmp.eq.s32.totalorder %s28, 3
      %p136 = por %p134, %p135
      %p137 = scmp.ne.s32.totalorder %s126, %s127
      %p138 = scmp.eq.s32.totalorder %s28, 0
      %p139 = por %p137, %p138
      %p140 = scmp.ne.s32.totalorder %s126, %s127
      %p141 = scmp.eq.s32.totalorder %s29, 3
      %p142 = por %p140, %p141
      %p144 = scmp.ne.s32.totalorder %s127, %s143
      %p145 = scmp.eq.s32.totalorder %s29, 0
      %p146 = por %p144, %p145
      %s147 = ssub.s32 %s31, %s38
      %p148 = scmp.eq.s32.totalorder %s147, 0
      %s150 = sadd.s32 %s149, 1
      %s151 = scalar_select %p148, %s149, %s150
      %p154 = pneg %p148
      %p155 = scmp.eq.s32.totalorder %s23, 3
      %p156 = por %p154, %p155
      %p157 = scmp.ne.s32.totalorder %s149, %s152
      %p158 = scmp.eq.s32.totalorder %s23, 0
      %p159 = por %p157, %p158
      %p160 = scmp.ne.s32.totalorder %s149, %s152
      %p161 = scmp.eq.s32.totalorder %s28, 3
      %p162 = por %p160, %p161
      %p163 = scmp.ne.s32.totalorder %s152, %s153
      %p164 = scmp.eq.s32.totalorder %s28, 0
      %p165 = por %p163, %p164
      %p166 = scmp.ne.s32.totalorder %s152, %s153
      %p167 = scmp.eq.s32.totalorder %s29, 3
      %p168 = por %p166, %p167
      %p170 = scmp.ne.s32.totalorder %s153, %s169
      %p171 = scmp.eq.s32.totalorder %s29, 0
      %p172 = por %p170, %p171
      %s173 = ssub.s32 %s31, %s38
      %p174 = scmp.eq.s32.totalorder %s173, 0
      %s176 = sadd.s32 %s175, 1
      %s177 = scalar_select %p174, %s175, %s176
      %p180 = pneg %p174
      %p181 = scmp.eq.s32.totalorder %s23, 3
      %p182 = por %p180, %p181
      %p183 = scmp.ne.s32.totalorder %s175, %s178
      %p184 = scmp.eq.s32.totalorder %s23, 0
      %p185 = por %p183, %p184
      %p186 = scmp.ne.s32.totalorder %s175, %s178
      %p187 = scmp.eq.s32.totalorder %s28, 3
      %p188 = por %p186, %p187
      %p189 = scmp.ne.s32.totalorder %s178, %s179
      %p190 = scmp.eq.s32.totalorder %s28, 0
      %p191 = por %p189, %p190
      %p192 = scmp.ne.s32.totalorder %s178, %s179
      %p193 = scmp.eq.s32.totalorder %s29, 3
      %p194 = por %p192, %p193
      %p196 = scmp.ne.s32.totalorder %s179, %s195
      %p197 = scmp.eq.s32.totalorder %s29, 0
      %p198 = por %p196, %p197
      %s199 = ssub.s32 %s31, %s38
      %p200 = scmp.eq.s32.totalorder %s199, 0
      %s202 = sadd.s32 %s201, 1
      %s203 = scalar_select %p200, %s201, %s202
      %p206 = pneg %p200
      %p207 = scmp.eq.s32.totalorder %s23, 3
      %p208 = por %p206, %p207
      %p209 = scmp.ne.s32.totalorder %s201, %s204
      %p210 = scmp.eq.s32.totalorder %s23, 0
      %p211 = por %p209, %p210
      %p212 = scmp.ne.s32.totalorder %s201, %s204
      %p213 = scmp.eq.s32.totalorder %s28, 3
      %p214 = por %p212, %p213
      %p215 = scmp.ne.s32.totalorder %s204, %s205
      %p216 = scmp.eq.s32.totalorder %s28, 0
      %p217 = por %p215, %p216
      %p218 = scmp.ne.s32.totalorder %s204, %s205
      %p219 = scmp.eq.s32.totalorder %s29, 3
      %p220 = por %p218, %p219
      %p222 = scmp.ne.s32.totalorder %s205, %s221
      %p223 = scmp.eq.s32.totalorder %s29, 0
      %p224 = por %p222, %p223
      %s225 = ssub.s32 %s31, %s38
      %p226 = scmp.eq.s32.totalorder %s225, 0
      %s228 = sadd.s32 %s227, 1
      %s229 = scalar_select %p226, %s227, %s228
      %p232 = pneg %p226
      %p233 = scmp.eq.s32.totalorder %s23, 3
      %p234 = por %p232, %p233
      %p235 = scmp.ne.s32.totalorder %s227, %s230
      %p236 = scmp.eq.s32.totalorder %s23, 0
      %p237 = por %p235, %p236
      %p238 = scmp.ne.s32.totalorder %s227, %s230
      %p239 = scmp.eq.s32.totalorder %s28, 3
      %p240 = por %p238, %p239
      %p241 = scmp.ne.s32.totalorder %s230, %s231
      %p242 = scmp.eq.s32.totalorder %s28, 0
      %p243 = por %p241, %p242
      %p244 = scmp.ne.s32.totalorder %s230, %s231
      %p245 = scmp.eq.s32.totalorder %s29, 3
      %p246 = por %p244, %p245
      %p248 = scmp.ne.s32.totalorder %s231, %s247
      %p249 = scmp.eq.s32.totalorder %s29, 0
      %p250 = por %p248, %p249
      %s251 = ssub.s32 %s31, %s38
      %p252 = scmp.eq.s32.totalorder %s251, 0
      %s254 = sadd.s32 %s253, 1
      %s255 = scalar_select %p252, %s253, %s254
      %p258 = pneg %p252
      %p259 = scmp.eq.s32.totalorder %s23, 3
      %p260 = por %p258, %p259
      %p261 = scmp.ne.s32.totalorder %s253, %s256
      %p262 = scmp.eq.s32.totalorder %s23, 0
      %p263 = por %p261, %p262
      %p264 = scmp.ne.s32.totalorder %s253, %s256
      %p265 = scmp.eq.s32.totalorder %s28, 3
      %p266 = por %p264, %p265
      %p267 = scmp.ne.s32.totalorder %s256, %s257
      %p268 = scmp.eq.s32.totalorder %s28, 0
      %p269 = por %p267, %p268
      %p270 = scmp.ne.s32.totalorder %s256, %s257
      %p271 = scmp.eq.s32.totalorder %s29, 3
      %p272 = por %p270, %p271
      %p274 = scmp.ne.s32.totalorder %s257, %s273
      %p275 = scmp.eq.s32.totalorder %s29, 0
      %p276 = por %p274, %p275
      %s277 = ssub.s32 %s31, %s38
      %p278 = scmp.eq.s32.totalorder %s277, 0
      %s280 = sadd.s32 %s279, 1
      %s281 = scalar_select %p278, %s279, %s280
      %p284 = pneg %p278
      %p285 = scmp.eq.s32.totalorder %s23, 3
      %p286 = por %p284, %p285
      %p287 = scmp.ne.s32.totalorder %s279, %s282
      %p288 = scmp.eq.s32.totalorder %s23, 0
      %p289 = por %p287, %p288
      %p290 = scmp.ne.s32.totalorder %s279, %s282
      %p291 = scmp.eq.s32.totalorder %s28, 3
      %p292 = por %p290, %p291
      %p293 = scmp.ne.s32.totalorder %s282, %s283
      %p294 = scmp.eq.s32.totalorder %s28, 0
      %p295 = por %p293, %p294
      %p296 = scmp.ne.s32.totalorder %s282, %s283
      %p297 = scmp.eq.s32.totalorder %s29, 3
      %p298 = por %p296, %p297
      %p300 = scmp.ne.s32.totalorder %s283, %s299
      %p301 = scmp.eq.s32.totalorder %s29, 0
      %p302 = por %p300, %p301
      %s303 = ssub.s32 %s31, %s38
      %p304 = scmp.eq.s32.totalorder %s303, 0
      %s306 = sadd.s32 %s305, 1
      %s307 = scalar_select %p304, %s305, %s306
      %p310 = pneg %p304
      %p311 = scmp.eq.s32.totalorder %s23, 3
      %p312 = por %p310, %p311
      %p313 = scmp.ne.s32.totalorder %s305, %s308
      %p314 = scmp.eq.s32.totalorder %s23, 0
      %p315 = por %p313, %p314
      %p316 = scmp.ne.s32.totalorder %s305, %s308
      %p317 = scmp.eq.s32.totalorder %s28, 3
      %p318 = por %p316, %p317
      %p319 = scmp.ne.s32.totalorder %s308, %s309
      %p320 = scmp.eq.s32.totalorder %s28, 0
      %p321 = por %p319, %p320
      %p322 = scmp.ne.s32.totalorder %s308, %s309
      %p323 = scmp.eq.s32.totalorder %s29, 3
      %p324 = por %p322, %p323
      %p326 = scmp.ne.s32.totalorder %s309, %s325
      %p327 = scmp.eq.s32.totalorder %s29, 0
      %p328 = por %p326, %p327
      %s329 = ssub.s32 %s31, %s38
      %p330 = scmp.eq.s32.totalorder %s329, 0
      %s332 = sadd.s32 %s331, 1
      %s333 = scalar_select %p330, %s331, %s332
      %p336 = pneg %p330
      %p337 = scmp.eq.s32.totalorder %s23, 3
      %p338 = por %p336, %p337
      %p339 = scmp.ne.s32.totalorder %s331, %s334
      %p340 = scmp.eq.s32.totalorder %s23, 0
      %p341 = por %p339, %p340
      %p342 = scmp.ne.s32.totalorder %s331, %s334
      %p343 = scmp.eq.s32.totalorder %s28, 3
      %p344 = por %p342, %p343
      %p345 = scmp.ne.s32.totalorder %s334, %s335
      %p346 = scmp.eq.s32.totalorder %s28, 0
      %p347 = por %p345, %p346
      %p348 = scmp.ne.s32.totalorder %s334, %s335
      %p349 = scmp.eq.s32.totalorder %s29, 3
      %p350 = por %p348, %p349
      %p352 = scmp.ne.s32.totalorder %s335, %s351
      %p353 = scmp.eq.s32.totalorder %s29, 0
      %p354 = por %p352, %p353
      %s355 = ssub.s32 %s31, %s38
      %p356 = scmp.eq.s32.totalorder %s355, 0
      %s358 = sadd.s32 %s357, 1
      %s359 = scalar_select %p356, %s357, %s358
      %p362 = pneg %p356
      %p363 = scmp.eq.s32.totalorder %s23, 3
      %p364 = por %p362, %p363
      %p365 = scmp.ne.s32.totalorder %s357, %s360
      %p366 = scmp.eq.s32.totalorder %s23, 0
      %p367 = por %p365, %p366
      %p368 = scmp.ne.s32.totalorder %s357, %s360
      %p369 = scmp.eq.s32.totalorder %s28, 3
      %p370 = por %p368, %p369
      %p371 = scmp.ne.s32.totalorder %s360, %s361
      %p372 = scmp.eq.s32.totalorder %s28, 0
      %p373 = por %p371, %p372
      %p374 = scmp.ne.s32.totalorder %s360, %s361
      %p375 = scmp.eq.s32.totalorder %s29, 3
      %p376 = por %p374, %p375
      %p378 = scmp.ne.s32.totalorder %s361, %s377
      %p379 = scmp.eq.s32.totalorder %s29, 0
      %p380 = por %p378, %p379
      %s381 = ssub.s32 %s31, %s38
      %p382 = scmp.eq.s32.totalorder %s381, 0
      %s384 = sadd.s32 %s383, 1
      %s385 = scalar_select %p382, %s383, %s384
      %p388 = pneg %p382
      %p389 = scmp.eq.s32.totalorder %s23, 3
      %p390 = por %p388, %p389
      %p391 = scmp.ne.s32.totalorder %s383, %s386
      %p392 = scmp.eq.s32.totalorder %s23, 0
      %p393 = por %p391, %p392
      %p394 = scmp.ne.s32.totalorder %s383, %s386
      %p395 = scmp.eq.s32.totalorder %s28, 3
      %p396 = por %p394, %p395
      %p397 = scmp.ne.s32.totalorder %s386, %s387
      %p398 = scmp.eq.s32.totalorder %s28, 0
      %p399 = por %p397, %p398
      %p400 = scmp.ne.s32.totalorder %s386, %s387
      %p401 = scmp.eq.s32.totalorder %s29, 3
      %p402 = por %p400, %p401
      %p404 = scmp.ne.s32.totalorder %s387, %s403
      %p405 = scmp.eq.s32.totalorder %s29, 0
      %p406 = por %p404, %p405
      %s407 = ssub.s32 %s30, %s42
      %p408 = scmp.eq.s32.totalorder %s407, 0
      %s410 = sadd.s32 %s409, 1
      %s411 = scalar_select %p408, %s409, %s410
      %p414 = pneg %p408
      %p415 = scmp.eq.s32.totalorder %s23, 3
      %p416 = por %p414, %p415
      %p417 = scmp.ne.s32.totalorder %s409, %s412
      %p418 = scmp.eq.s32.totalorder %s23, 0
      %p419 = por %p417, %p418
      %p420 = scmp.ne.s32.totalorder %s409, %s412
      %p421 = scmp.eq.s32.totalorder %s28, 3
      %p422 = por %p420, %p421
      %p423 = scmp.ne.s32.totalorder %s412, %s413
      %p424 = scmp.eq.s32.totalorder %s28, 0
      %p425 = por %p423, %p424
      %p426 = scmp.ne.s32.totalorder %s412, %s413
      %p427 = scmp.eq.s32.totalorder %s29, 3
      %p428 = por %p426, %p427
      %p430 = scmp.ne.s32.totalorder %s413, %s429
      %p431 = scmp.eq.s32.totalorder %s29, 0
      %p432 = por %p430, %p431
      %p433 = scmp.le.s32.totalorder 1, %s23
      %p434 = scmp.lt.s32.totalorder %s23, 5
      %p435 = pnand %p433, %p434
      %p436 = pneg %p435
      // Predicated region
      $region9: #{encoder_forward.1} parent=5 // pred_check
        _
      $region10: #{encoder_forward.1} parent=5 // pred_check_branch
        %438 = sbr.rel (%p435) target = $region12
      $region11: #{encoder_forward.1} parent=5 // pred_region
        %s439 = ssub.s32 %s23, 1
      $region12: #{encoder_forward.1} parent=5 // pred_fallthru
        _
      %p440 = scmp.lt.s32.totalorder %s23, 4
      // Predicated region
      $region13: #{encoder_forward.1} parent=5 // pred_check
        %p441 = pneg %p440
      $region14: #{encoder_forward.1} parent=5 // pred_check_branch
        %443 = sbr.rel (%p441) target = $region16
      $region15: #{encoder_forward.1} parent=5 // pred_region
        // Predicated region
        $region17: #{encoder_forward.1} parent=15 // pred_check
          %p444 = pneg %p55
        $region18: #{encoder_forward.1} parent=15 // pred_check_branch
          %446 = sbr.rel (%p444) target = $region20
        $region19: #{encoder_forward.1} parent=15 // pred_region
          %p447 = scmp.lt.s32.totalorder %s30, 1
          %s448 = scalar_select %p447, %s30, 1
          %s449 = smul.addr %s448, 8
          %s450 = scalar_lea.vmem %s0, %s449
        $region20: #{encoder_forward.1} parent=15 // pred_fallthru
          _
        // Predicated region
        $region21: #{encoder_forward.1} parent=15 // pred_check
          %p451 = pneg %p81
        $region22: #{encoder_forward.1} parent=15 // pred_check_branch
          %453 = sbr.rel (%p451) target = $region24
        $region23: #{encoder_forward.1} parent=15 // pred_region
          %p454 = scmp.lt.s32.totalorder %s30, 1
          %s455 = scalar_select %p454, %s30, 1
          %s456 = scalar_lea.vmem %s1, %s455
        $region24: #{encoder_forward.1} parent=15 // pred_fallthru
          _
        // Predicated region
        $region25: #{encoder_forward.1} parent=15 // pred_check
          %p457 = pneg %p107
        $region26: #{encoder_forward.1} parent=15 // pred_check_branch
          %459 = sbr.rel (%p457) target = $region28
        $region27: #{encoder_forward.1} parent=15 // pred_region
          %p460 = scmp.lt.s32.totalorder %s31, 1
          %s461 = scalar_select %p460, %s31, 1
          %s462 = smul.addr %s461, 4
          %s463 = smul.addr %s462, 4
          %s464 = scalar_lea.vmem %s2, %s463
        $region28: #{encoder_forward.1} parent=15 // pred_fallthru
          _
        // Predicated region
        $region29: #{encoder_forward.1} parent=15 // pred_check
          %p465 = pneg %p133
        $region30: #{encoder_forward.1} parent=15 // pred_check_branch
          %467 = sbr.rel (%p465) target = $region32
        $region31: #{encoder_forward.1} parent=15 // pred_region
          %p468 = scmp.lt.s32.totalorder %s31, 1
          %s469 = scalar_select %p468, %s31, 1
          %s470 = scalar_lea.vmem %s3, %s469
        $region32: #{encoder_forward.1} parent=15 // pred_fallthru
          _
        // Predicated region
        $region33: #{encoder_forward.1} parent=15 // pred_check
          %p471 = pneg %p159
        $region34: #{encoder_forward.1} parent=15 // pred_check_branch
          %473 = sbr.rel (%p471) target = $region36
        $region35: #{encoder_forward.1} parent=15 // pred_region
          %p474 = scmp.lt.s32.totalorder %s31, 1
          %s475 = scalar_select %p474, %s31, 1
          %s476 = smul.addr %s475, 4
          %s477 = smul.addr %s476, 4
          %s478 = scalar_lea.vmem %s4, %s477
        $region36: #{encoder_forward.1} parent=15 // pred_fallthru
          _
        // Predicated region
        $region37: #{encoder_forward.1} parent=15 // pred_check
          %p479 = pneg %p185
        $region38: #{encoder_forward.1} parent=15 // pred_check_branch
          %481 = sbr.rel (%p479) target = $region40
        $region39: #{encoder_forward.1} parent=15 // pred_region
          %p482 = scmp.lt.s32.totalorder %s31, 1
          %s483 = scalar_select %p482, %s31, 1
          %s484 = scalar_lea.vmem %s5, %s483
        $region40: #{encoder_forward.1} parent=15 // pred_fallthru
          _
        // Predicated region
        $region41: #{encoder_forward.1} parent=15 // pred_check
          %p485 = pneg %p211
        $region42: #{encoder_forward.1} parent=15 // pred_check_branch
          %487 = sbr.rel (%p485) target = $region44
        $region43: #{encoder_forward.1} parent=15 // pred_region
          %p488 = scmp.lt.s32.totalorder %s31, 1
          %s489 = scalar_select %p488, %s31, 1
          %s490 = scalar_lea.vmem %s6, %s489
        $region44: #{encoder_forward.1} parent=15 // pred_fallthru
          _
        // Predicated region
        $region45: #{encoder_forward.1} parent=15 // pred_check
          %p491 = pneg %p237
        $region46: #{encoder_forward.1} parent=15 // pred_check_branch
          %493 = sbr.rel (%p491) target = $region48
        $region47: #{encoder_forward.1} parent=15 // pred_region
          %p494 = scmp.lt.s32.totalorder %s31, 1
          %s495 = scalar_select %p494, %s31, 1
          %s496 = scalar_lea.vmem %s7, %s495
        $region48: #{encoder_forward.1} parent=15 // pred_fallthru
          _
        // Predicated region
        $region49: #{encoder_forward.1} parent=15 // pred_check
          %p497 = pneg %p263
        $region50: #{encoder_forward.1} parent=15 // pred_check_branch
          %499 = sbr.rel (%p497) target = $region52
        $region51: #{encoder_forward.1} parent=15 // pred_region
          %p500 = scmp.lt.s32.totalorder %s31, 1
          %s501 = scalar_select %p500, %s31, 1
          %s502 = scalar_lea.vmem %s8, %s501
        $region52: #{encoder_forward.1} parent=15 // pred_fallthru
          _
        // Predicated region
        $region53: #{encoder_forward.1} parent=15 // pred_check
          %p503 = pneg %p289
        $region54: #{encoder_forward.1} parent=15 // pred_check_branch
          %505 = sbr.rel (%p503) target = $region56
        $region55: #{encoder_forward.1} parent=15 // pred_region
          %p506 = scmp.lt.s32.totalorder %s31, 1
          %s507 = scalar_select %p506, %s31, 1
          %s508 = scalar_lea.vmem %s9, %s507
        $region56: #{encoder_forward.1} parent=15 // pred_fallthru
          _
        // Predicated region
        $region57: #{encoder_forward.1} parent=15 // pred_check
          %p509 = pneg %p315
        $region58: #{encoder_forward.1} parent=15 // pred_check_branch
          %511 = sbr.rel (%p509) target = $region60
        $region59: #{encoder_forward.1} parent=15 // pred_region
          %p512 = scmp.lt.s32.totalorder %s31, 1
          %s513 = scalar_select %p512, %s31, 1
          %s514 = smul.addr %s513, 4
          %s515 = smul.addr %s514, 4
          %s516 = scalar_lea.vmem %s10, %s515
        $region60: #{encoder_forward.1} parent=15 // pred_fallthru
          _
        // Predicated region
        $region61: #{encoder_forward.1} parent=15 // pred_check
          %p517 = pneg %p341
        $region62: #{encoder_forward.1} parent=15 // pred_check_branch
          %519 = sbr.rel (%p517) target = $region64
        $region63: #{encoder_forward.1} parent=15 // pred_region
          %p520 = scmp.lt.s32.totalorder %s31, 1
          %s521 = scalar_select %p520, %s31, 1
          %s522 = scalar_lea.vmem %s11, %s521
        $region64: #{encoder_forward.1} parent=15 // pred_fallthru
          _
        // Predicated region
        $region65: #{encoder_forward.1} parent=15 // pred_check
          %p523 = pneg %p367
        $region66: #{encoder_forward.1} parent=15 // pred_check_branch
          %525 = sbr.rel (%p523) target = $region68
        $region67: #{encoder_forward.1} parent=15 // pred_region
          %p526 = scmp.lt.s32.totalorder %s31, 1
          %s527 = scalar_select %p526, %s31, 1
          %s528 = smul.addr %s527, 8
          %s529 = smul.addr %s528, 4
          %s530 = scalar_lea.vmem %s12, %s529
        $region68: #{encoder_forward.1} parent=15 // pred_fallthru
          _
        // Predicated region
        $region69: #{encoder_forward.1} parent=15 // pred_check
          %p531 = pneg %p393
        $region70: #{encoder_forward.1} parent=15 // pred_check_branch
          %533 = sbr.rel (%p531) target = $region72
        $region71: #{encoder_forward.1} parent=15 // pred_region
          %p534 = scmp.lt.s32.totalorder %s31, 1
          %s535 = scalar_select %p534, %s31, 1
          %s536 = scalar_lea.vmem %s13, %s535
        $region72: #{encoder_forward.1} parent=15 // pred_fallthru
          _
      $region16: #{encoder_forward.1} parent=5 // pred_fallthru
        _
      %p537 = scmp.le.s32.totalorder 1, %s23
      %p538 = scmp.lt.s32.totalorder %s23, 5
      %p539 = pnand %p537, %p538
      %p540 = pneg %p539
      // Predicated region
      $region73: #{encoder_forward.1} parent=5 // pred_check
        _
      $region74: #{encoder_forward.1} parent=5 // pred_check_branch
        %542 = sbr.rel (%p539) target = $region76
      $region75: #{encoder_forward.1} parent=5 // pred_region
        %s543 = ssub.s32 %s23, 1
        %p544 = scmp.lt.s32.totalorder %s32, 1
        %s545 = scalar_select %p544, %s32, 1
        %s546 = smul.addr %s545, 8
        %s547 = scalar_lea.vmem %s0, %s546
        %p548 = pneg %p61
        %p549 = pneg %p58
        %p550 = scmp.lt.s32.totalorder %s32, 1
        %s551 = scalar_select %p550, %s32, 1
        %s552 = scalar_lea.vmem %s1, %s551
        %p553 = pneg %p87
        %p554 = pneg %p84
        %p555 = scmp.lt.s32.totalorder %s33, 1
        %s556 = scalar_select %p555, %s33, 1
        %s557 = smul.addr %s556, 4
        %s558 = smul.addr %s557, 4
        %s559 = scalar_lea.vmem %s2, %s558
        %p560 = pneg %p113
        %p561 = pneg %p110
        %p562 = scmp.lt.s32.totalorder %s33, 1
        %s563 = scalar_select %p562, %s33, 1
        %s564 = scalar_lea.vmem %s3, %s563
        %p565 = pneg %p139
        %p566 = pneg %p136
        %p567 = scmp.lt.s32.totalorder %s33, 1
        %s568 = scalar_select %p567, %s33, 1
        %s569 = smul.addr %s568, 4
        %s570 = smul.addr %s569, 4
        %s571 = scalar_lea.vmem %s4, %s570
        %p572 = pneg %p165
        %p573 = pneg %p162
        %p574 = scmp.lt.s32.totalorder %s33, 1
        %s575 = scalar_select %p574, %s33, 1
        %s576 = scalar_lea.vmem %s5, %s575
        %p577 = pneg %p191
        %p578 = pneg %p188
        %p579 = scmp.lt.s32.totalorder %s33, 1
        %s580 = scalar_select %p579, %s33, 1
        %s581 = scalar_lea.vmem %s6, %s580
        %p582 = pneg %p217
        %p583 = pneg %p214
        %p584 = scmp.lt.s32.totalorder %s33, 1
        %s585 = scalar_select %p584, %s33, 1
        %s586 = scalar_lea.vmem %s7, %s585
        %p587 = pneg %p243
        %p588 = pneg %p240
        %p589 = scmp.lt.s32.totalorder %s33, 1
        %s590 = scalar_select %p589, %s33, 1
        %s591 = scalar_lea.vmem %s8, %s590
        %p592 = pneg %p269
        %p593 = pneg %p266
        %p594 = scmp.lt.s32.totalorder %s33, 1
        %s595 = scalar_select %p594, %s33, 1
        %s596 = scalar_lea.vmem %s9, %s595
        %p597 = pneg %p295
        %p598 = pneg %p292
        %p599 = scmp.lt.s32.totalorder %s33, 1
        %s600 = scalar_select %p599, %s33, 1
        %s601 = smul.addr %s600, 4
        %s602 = smul.addr %s601, 4
        %s603 = scalar_lea.vmem %s10, %s602
        %p604 = pneg %p321
        %p605 = pneg %p318
        %p606 = scmp.lt.s32.totalorder %s33, 1
        %s607 = scalar_select %p606, %s33, 1
        %s608 = scalar_lea.vmem %s11, %s607
        %p609 = pneg %p347
        %p610 = pneg %p344
        %p611 = scmp.lt.s32.totalorder %s33, 1
        %s612 = scalar_select %p611, %s33, 1
        %s613 = smul.addr %s612, 8
        %s614 = smul.addr %s613, 4
        %s615 = scalar_lea.vmem %s12, %s614
        %p616 = pneg %p373
        %p617 = pneg %p370
        %p618 = scmp.lt.s32.totalorder %s33, 1
        %s619 = scalar_select %p618, %s33, 1
        %s620 = scalar_lea.vmem %s13, %s619
        %p621 = pneg %p399
        %p622 = pneg %p396
        %p623 = pneg %p425
        %p624 = pneg %p422
        %s625 = sand.u32 %s412, 1
        %s626 = scalar_lea.sflag [#allocation4], %s625
        %s627 = sand.u32 %s412, 1
        %s628 = smul.addr %s627, 8
        %s629 = scalar_lea.vmem [#allocation3], %s628
        %p630 = scmp.lt.s32.totalorder %s32, 1
        %s631 = scalar_select %p630, %s32, 1
        %s632 = smul.addr %s631, 8
        %s633 = scalar_lea.vmem %s0, %s632
        %p634 = scmp.lt.s32.totalorder %s32, 1
        %s635 = scalar_select %p634, %s32, 1
        %s636 = scalar_lea.vmem %s1, %s635
        %p637 = scmp.lt.s32.totalorder %s33, 1
        %s638 = scalar_select %p637, %s33, 1
        %s639 = smul.addr %s638, 4
        %s640 = smul.addr %s639, 4
        %s641 = scalar_lea.vmem %s2, %s640
        %p642 = scmp.lt.s32.totalorder %s33, 1
        %s643 = scalar_select %p642, %s33, 1
        %s644 = scalar_lea.vmem %s3, %s643
        %p645 = scmp.lt.s32.totalorder %s33, 1
        %s646 = scalar_select %p645, %s33, 1
        %s647 = smul.addr %s646, 4
        %s648 = smul.addr %s647, 4
        %s649 = scalar_lea.vmem %s4, %s648
        %p650 = scmp.lt.s32.totalorder %s33, 1
        %s651 = scalar_select %p650, %s33, 1
        %s652 = scalar_lea.vmem %s5, %s651
        %p653 = scmp.lt.s32.totalorder %s33, 1
        %s654 = scalar_select %p653, %s33, 1
        %s655 = scalar_lea.vmem %s6, %s654
        %p656 = scmp.lt.s32.totalorder %s33, 1
        %s657 = scalar_select %p656, %s33, 1
        %s658 = scalar_lea.vmem %s7, %s657
        %p659 = scmp.lt.s32.totalorder %s33, 1
        %s660 = scalar_select %p659, %s33, 1
        %s661 = scalar_lea.vmem %s8, %s660
        %p662 = scmp.lt.s32.totalorder %s33, 1
        %s663 = scalar_select %p662, %s33, 1
        %s664 = scalar_lea.vmem %s9, %s663
        %p665 = scmp.lt.s32.totalorder %s33, 1
        %s666 = scalar_select %p665, %s33, 1
        %s667 = smul.addr %s666, 4
        %s668 = smul.addr %s667, 4
        %s669 = scalar_lea.vmem %s10, %s668
        %p670 = scmp.lt.s32.totalorder %s33, 1
        %s671 = scalar_select %p670, %s33, 1
        %s672 = scalar_lea.vmem %s11, %s671
        %p673 = scmp.lt.s32.totalorder %s33, 1
        %s674 = scalar_select %p673, %s33, 1
        %s675 = smul.addr %s674, 8
        %s676 = smul.addr %s675, 4
        %s677 = scalar_lea.vmem %s12, %s676
        %p678 = scmp.lt.s32.totalorder %s33, 1
        %s679 = scalar_select %p678, %s33, 1
        %s680 = scalar_lea.vmem %s13, %s679
        %p682 = scmp.eq.s32.totalorder %s33, 0
        // Predicated region
        $region77: #{encoder_forward.1} parent=75 // pred_check
          %p683 = pneg %p682
        $region78: #{encoder_forward.1} parent=75 // pred_check_branch
          %685 = sbr.rel (%p683) target = $region80
        $region79: #{encoder_forward.1} parent=75 // pred_region
          %v686 = vld [vmem:[%s633] sm:$0xff]
          %vm687 = vcmask 261120
          %688 = vst.msk [vmem:[%s629] sm:$0xff] %vm687, %v686
        $region80: #{encoder_forward.1} parent=75 // pred_fallthru
          _
        %v689 = vld [vmem:[%s629] sm:$0xff]
        %v690 = vpack.c.bf16 %v689, %v689
        %v691 = vld [vmem:[%s641] sm:$0xf]
        %v692 = vld [vmem:[%s641 + $0x4] sm:$0xf]
        %v693 = vld [vmem:[%s641 + $0x8] sm:$0xf]
        %v694 = vld [vmem:[%s641 + $0xc] sm:$0xf]
        %v695 = vld [vmem:[%s644] sm:$0x1]
        %v697 = vlaneseq
        %v698 = vshrl.u32 %v697, 7
        %v699 = vsub.s32 0, %v698
        %v700 = vrot.slane %v695, %v699
        %v706 = vunpack.c.l.b16 %v691
        %v707 = vunpack.c.l.b16 %v692
        %v708 = vunpack.c.l.b16 %v693
        %v709 = vunpack.c.l.b16 %v694
        %v710 = vpack.c.b16 %v707, %v706
        %v711 = vpack.c.b16 %v709, %v708
        %vm714 = vcmask 261120
        %v716 = vsel %vm714, %v690, 0
        %718 = vmatprep.subr.bf16.mxu0 0
        %719 = vmatpush1.bf16.msra.mxu0 %v710
        %720 = vmatprep.subr.bf16.mxu0 0
        %721 = vmatpush1.bf16.msra.mxu0 %v711
        %722 = vmatprep.subr.bf16.mxu0 0
        %723 = vmatpush1.bf16.msra.mxu0 0
        %724 = vmatprep.subr.bf16.mxu0 0
        %725 = vmatpush1.bf16.msra.mxu0 0
        %726 = vmatprep.subr.bf16.mxu0 0
        %727 = vmatpush1.bf16.msra.mxu0 0
        %728 = vmatprep.subr.bf16.mxu0 0
        %729 = vmatpush1.bf16.msra.mxu0 0
        %730 = vmatprep.subr.bf16.mxu0 0
        %731 = vmatpush1.bf16.msra.mxu0 0
        %732 = vmatprep.subr.bf16.mxu0 0
        %733 = vmatpush1.bf16.msra.mxu0 0
        %734 = vmatprep.subr.bf16.mxu0 0
        %735 = vmatpush1.bf16.msra.mxu0 0
        %736 = vmatprep.subr.bf16.mxu0 0
        %737 = vmatpush1.bf16.msra.mxu0 0
        %738 = vmatprep.subr.bf16.mxu0 0
        %739 = vmatpush1.bf16.msra.mxu0 0
        %740 = vmatprep.subr.bf16.mxu0 0
        %741 = vmatpush1.bf16.msra.mxu0 0
        %742 = vmatprep.subr.bf16.mxu0 0
        %743 = vmatpush1.bf16.msra.mxu0 0
        %744 = vmatprep.subr.bf16.mxu0 0
        %745 = vmatpush1.bf16.msra.mxu0 0
        %746 = vmatprep.subr.bf16.mxu0 0
        %747 = vmatpush1.bf16.msra.mxu0 0
        %748 = vmatprep.subr.bf16.mxu0 0
        %749 = vmatpush1.bf16.msra.mxu0 0
        %750 = vmatprep.mubr.bf16.mxu0 0
        %751 = vmatmul.mubr.bf16.gmra.mrb[0].mxu0 %v716
        %v752 = vpop.f32.mrb[0].mxu0
        %v753 = vadd.f32 %v700, %v752
        %v754 = vpop.f32.mrb[0].mxu0
        %v755 = vpop.f32.mrb[0].mxu0
        %v756 = vpop.f32.mrb[0].mxu0
        %757 = vdwg.mxu0
        %v758 = vpack.c.bf16 %v753, %v753
        %v759 = vld [vmem:[%s636] sm:$0x1]
        %v761 = vlaneseq
        %v762 = vshrl.u32 %v761, 7
        %v763 = vsub.s32 0, %v762
        %v764 = vrot.slane %v759, %v763
        %767 = vrot.lane.b32.xlu0 %v758, 96
        %v768 = vpop.permute.xlu0 %767
        %vm769 = vcmask 64512
        %v771 = vsel %vm769, %v758, 0
        %v774 = vsel %vm769, %v768, 0
        %776 = vmatprep.subr.bf16.mxu0 0
        %777 = vmatpush1.bf16.xpose.msra.mxu0 %v774
        %778 = vmatprep.subr.bf16.mxu0 0
        %779 = vmatpush1.bf16.xpose.msra.mxu0 0
        %780 = vmatprep.subr.bf16.mxu0 0
        %781 = vmatpush1.bf16.xpose.msra.mxu0 0
        %782 = vmatprep.subr.bf16.mxu0 0
        %783 = vmatpush1.bf16.xpose.msra.mxu0 0
        %784 = vmatprep.subr.bf16.mxu0 0
        %785 = vmatpush1.bf16.xpose.msra.mxu0 0
        %786 = vmatprep.subr.bf16.mxu0 0
        %787 = vmatpush1.bf16.xpose.msra.mxu0 0
        %788 = vmatprep.subr.bf16.mxu0 0
        %789 = vmatpush1.bf16.xpose.msra.mxu0 0
        %790 = vmatprep.subr.bf16.mxu0 0
        %791 = vmatpush1.bf16.xpose.msra.mxu0 0
        %792 = vmatprep.subr.bf16.mxu0 0
        %793 = vmatpush1.bf16.xpose.msra.mxu0 0
        %794 = vmatprep.subr.bf16.mxu0 0
        %795 = vmatpush1.bf16.xpose.msra.mxu0 0
        %796 = vmatprep.subr.bf16.mxu0 0
        %797 = vmatpush1.bf16.xpose.msra.mxu0 0
        %798 = vmatprep.subr.bf16.mxu0 0
        %799 = vmatpush1.bf16.xpose.msra.mxu0 0
        %800 = vmatprep.subr.bf16.mxu0 0
        %801 = vmatpush1.bf16.xpose.msra.mxu0 0
        %802 = vmatprep.subr.bf16.mxu0 0
        %803 = vmatpush1.bf16.xpose.msra.mxu0 0
        %804 = vmatprep.subr.bf16.mxu0 0
        %805 = vmatpush1.bf16.xpose.msra.mxu0 0
        %806 = vmatprep.subr.bf16.mxu0 0
        %807 = vmatpush1.bf16.xpose.msra.mxu0 0
        %808 = vmatprep.mubr.bf16.mxu0 0
        %809 = vmatmul.mubr.bf16.gmra.mrb[0].mxu0 %v771
        %v810 = vpop.f32.mrb[0].mxu0
        %v811 = vadd.f32 %v764, %v810
        %v812 = vpop.f32.mrb[0].mxu0
        %v813 = vpop.f32.mrb[0].mxu0
        %v814 = vpop.f32.mrb[0].mxu0
        %815 = vdwg.mxu0
        %v816 = vsel %vm769, %v811, -inf
        %817 = vmax.xlane.f32.xlu0 %v816
        %v818 = vpop.xlane.xlu0 %817
        %v819 = vsub.f32 %v811, %v818
        %v820 = vmul.f32 %v819, 1.442695
        %v821 = vpow.pop %v820
        %v822 = vsel %vm769, %v821, 0.0
        %823 = vadd.xlane.f32.xlu0 %v822
        %v824 = vpop.xlane.xlu0 %823
        %v825 = vrcp.pop %v824
        %v826 = vmul.f32 %v821, %v825
        %v827 = vpack.c.bf16 %v826, %v826
        %828 = vrot.lane.b32.xlu0 %v758, 64
        %v829 = vpop.permute.xlu0 %828
        %v831 = vsel %vm769, %v827, 0
        %vm833 = vcmask 1043456
        %v835 = vsel %vm833, %v829, 0
        %837 = vmatprep.subr.bf16.mxu0 0
        %838 = vmatpush1.bf16.msra.mxu0 %v835
        %839 = vmatprep.subr.bf16.mxu0 0
        %840 = vmatpush1.bf16.msra.mxu0 0
        %841 = vmatprep.subr.bf16.mxu0 0
        %842 = vmatpush1.bf16.msra.mxu0 0
        %843 = vmatprep.subr.bf16.mxu0 0
        %844 = vmatpush1.bf16.msra.mxu0 0
        %845 = vmatprep.subr.bf16.mxu0 0
        %846 = vmatpush1.bf16.msra.mxu0 0
        %847 = vmatprep.subr.bf16.mxu0 0
        %848 = vmatpush1.bf16.msra.mxu0 0
        %849 = vmatprep.subr.bf16.mxu0 0
        %850 = vmatpush1.bf16.msra.mxu0 0
        %851 = vmatprep.subr.bf16.mxu0 0
        %852 = vmatpush1.bf16.msra.mxu0 0
        %853 = vmatprep.subr.bf16.mxu0 0
        %854 = vmatpush1.bf16.msra.mxu0 0
        %855 = vmatprep.subr.bf16.mxu0 0
        %856 = vmatpush1.bf16.msra.mxu0 0
        %857 = vmatprep.subr.bf16.mxu0 0
        %858 = vmatpush1.bf16.msra.mxu0 0
        %859 = vmatprep.subr.bf16.mxu0 0
        %860 = vmatpush1.bf16.msra.mxu0 0
        %861 = vmatprep.subr.bf16.mxu0 0
        %862 = vmatpush1.bf16.msra.mxu0 0
        %863 = vmatprep.subr.bf16.mxu0 0
        %864 = vmatpush1.bf16.msra.mxu0 0
        %865 = vmatprep.subr.bf16.mxu0 0
        %866 = vmatpush1.bf16.msra.mxu0 0
        %867 = vmatprep.subr.bf16.mxu0 0
        %868 = vmatpush1.bf16.msra.mxu0 0
        %869 = vmatprep.mubr.bf16.mxu0 0
        %870 = vmatmul.mubr.bf16.gmra.mrb[0].mxu0 %v831
        %v871 = vpop.f32.mrb[0].mxu0
        %v872 = vadd.f32 0.0, %v871
        %v873 = vpop.f32.mrb[0].mxu0
        %v874 = vpop.f32.mrb[0].mxu0
        %v875 = vpop.f32.mrb[0].mxu0
        %876 = vdwg.mxu0
        %v877 = vpack.c.bf16 %v872, %v872
        %vm878 = vcmask 60416
        %879 = vst.msk [vmem:[#allocation2] sm:$0xf] %vm878, %v877
        %880 = vrot.lane.b32.xlu0 %v758, 120
        %v881 = vpop.permute.xlu0 %880
        %882 = vrot.lane.b32.xlu0 %v758, 88
        %v883 = vpop.permute.xlu0 %882
        %v885 = vsel %vm769, %v881, 0
        %v888 = vsel %vm769, %v883, 0
        %890 = vmatprep.subr.bf16.mxu0 0
        %891 = vmatpush1.bf16.xpose.msra.mxu0 %v888
        %892 = vmatprep.subr.bf16.mxu0 0
        %893 = vmatpush1.bf16.xpose.msra.mxu0 0
        %894 = vmatprep.subr.bf16.mxu0 0
        %895 = vmatpush1.bf16.xpose.msra.mxu0 0
        %896 = vmatprep.subr.bf16.mxu0 0
        %897 = vmatpush1.bf16.xpose.msra.mxu0 0
        %898 = vmatprep.subr.bf16.mxu0 0
        %899 = vmatpush1.bf16.xpose.msra.mxu0 0
        %900 = vmatprep.subr.bf16.mxu0 0
        %901 = vmatpush1.bf16.xpose.msra.mxu0 0
        %902 = vmatprep.subr.bf16.mxu0 0
        %903 = vmatpush1.bf16.xpose.msra.mxu0 0
        %904 = vmatprep.subr.bf16.mxu0 0
        %905 = vmatpush1.bf16.xpose.msra.mxu0 0
        %906 = vmatprep.subr.bf16.mxu0 0
        %907 = vmatpush1.bf16.xpose.msra.mxu0 0
        %908 = vmatprep.subr.bf16.mxu0 0
        %909 = vmatpush1.bf16.xpose.msra.mxu0 0
        %910 = vmatprep.subr.bf16.mxu0 0
        %911 = vmatpush1.bf16.xpose.msra.mxu0 0
        %912 = vmatprep.subr.bf16.mxu0 0
        %913 = vmatpush1.bf16.xpose.msra.mxu0 0
        %914 = vmatprep.subr.bf16.mxu0 0
        %915 = vmatpush1.bf16.xpose.msra.mxu0 0
        %916 = vmatprep.subr.bf16.mxu0 0
        %917 = vmatpush1.bf16.xpose.msra.mxu0 0
        %918 = vmatprep.subr.bf16.mxu0 0
        %919 = vmatpush1.bf16.xpose.msra.mxu0 0
        %920 = vmatprep.subr.bf16.mxu0 0
        %921 = vmatpush1.bf16.xpose.msra.mxu0 0
        %922 = vmatprep.mubr.bf16.mxu0 0
        %923 = vmatmul.mubr.bf16.gmra.mrb[0].mxu0 %v885
        %v924 = vpop.f32.mrb[0].mxu0
        %v925 = vadd.f32 %v764, %v924
        %v926 = vpop.f32.mrb[0].mxu0
        %v927 = vpop.f32.mrb[0].mxu0
        %v928 = vpop.f32.mrb[0].mxu0
        %929 = vdwg.mxu0
        %v930 = vsel %vm769, %v925, -inf
        %931 = vmax.xlane.f32.xlu0 %v930
        %v932 = vpop.xlane.xlu0 %931
        %v933 = vsub.f32 %v925, %v932
        %v934 = vmul.f32 %v933, 1.442695
        %v935 = vpow.pop %v934
        %v936 = vsel %vm769, %v935, 0.0
        %937 = vadd.xlane.f32.xlu0 %v936
        %v938 = vpop.xlane.xlu0 %937
        %v939 = vrcp.pop %v938
        %v940 = vmul.f32 %v935, %v939
        %v941 = vpack.c.bf16 %v940, %v940
        %942 = vrot.lane.b32.xlu0 %v758, 56
        %v943 = vpop.permute.xlu0 %942
        %v945 = vsel %vm769, %v941, 0
        %v948 = vsel %vm833, %v943, 0
        %950 = vmatprep.subr.bf16.mxu0 0
        %951 = vmatpush1.bf16.msra.mxu0 %v948
        %952 = vmatprep.subr.bf16.mxu0 0
        %953 = vmatpush1.bf16.msra.mxu0 0
        %954 = vmatprep.subr.bf16.mxu0 0
        %955 = vmatpush1.bf16.msra.mxu0 0
        %956 = vmatprep.subr.bf16.mxu0 0
        %957 = vmatpush1.bf16.msra.mxu0 0
        %958 = vmatprep.subr.bf16.mxu0 0
        %959 = vmatpush1.bf16.msra.mxu0 0
        %960 = vmatprep.subr.bf16.mxu0 0
        %961 = vmatpush1.bf16.msra.mxu0 0
        %962 = vmatprep.subr.bf16.mxu0 0
        %963 = vmatpush1.bf16.msra.mxu0 0
        %964 = vmatprep.subr.bf16.mxu0 0
        %965 = vmatpush1.bf16.msra.mxu0 0
        %966 = vmatprep.subr.bf16.mxu0 0
        %967 = vmatpush1.bf16.msra.mxu0 0
        %968 = vmatprep.subr.bf16.mxu0 0
        %969 = vmatpush1.bf16.msra.mxu0 0
        %970 = vmatprep.subr.bf16.mxu0 0
        %971 = vmatpush1.bf16.msra.mxu0 0
        %972 = vmatprep.subr.bf16.mxu0 0
        %973 = vmatpush1.bf16.msra.mxu0 0
        %974 = vmatprep.subr.bf16.mxu0 0
        %975 = vmatpush1.bf16.msra.mxu0 0
        %976 = vmatprep.subr.bf16.mxu0 0
        %977 = vmatpush1.bf16.msra.mxu0 0
        %978 = vmatprep.subr.bf16.mxu0 0
        %979 = vmatpush1.bf16.msra.mxu0 0
        %980 = vmatprep.subr.bf16.mxu0 0
        %981 = vmatpush1.bf16.msra.mxu0 0
        %982 = vmatprep.mubr.bf16.mxu0 0
        %983 = vmatmul.mubr.bf16.gmra.mrb[0].mxu0 %v945
        %v984 = vpop.f32.mrb[0].mxu0
        %v985 = vadd.f32 0.0, %v984
        %v986 = vpop.f32.mrb[0].mxu0
        %v987 = vpop.f32.mrb[0].mxu0
        %v988 = vpop.f32.mrb[0].mxu0
        %989 = vdwg.mxu0
        %v990 = vpack.c.bf16 %v985, %v985
        %v992 = vunpack.c.l.b16 %v990
        %v993 = vpack.c.b16 %v992, %v992
        %994 = vrot.lane.b32.xlu0 %v993, 8
        %v995 = vpop.permute.xlu0 %994
        %vm997 = vcmask 126016
        %998 = vst.msk [vmem:[#allocation2] sm:$0xf] %vm997, %v995
        %999 = vrot.lane.b32.xlu0 %v758, 112
        %v1000 = vpop.permute.xlu0 %999
        %1001 = vrot.lane.b32.xlu0 %v758, 80
        %v1002 = vpop.permute.xlu0 %1001
        %v1004 = vsel %vm769, %v1000, 0
        %v1007 = vsel %vm769, %v1002, 0
        %1009 = vmatprep.subr.bf16.mxu0 0
        %1010 = vmatpush1.bf16.xpose.msra.mxu0 %v1007
        %1011 = vmatprep.subr.bf16.mxu0 0
        %1012 = vmatpush1.bf16.xpose.msra.mxu0 0
        %1013 = vmatprep.subr.bf16.mxu0 0
        %1014 = vmatpush1.bf16.xpose.msra.mxu0 0
        %1015 = vmatprep.subr.bf16.mxu0 0
        %1016 = vmatpush1.bf16.xpose.msra.mxu0 0
        %1017 = vmatprep.subr.bf16.mxu0 0
        %1018 = vmatpush1.bf16.xpose.msra.mxu0 0
        %1019 = vmatprep.subr.bf16.mxu0 0
        %1020 = vmatpush1.bf16.xpose.msra.mxu0 0
        %1021 = vmatprep.subr.bf16.mxu0 0
        %1022 = vmatpush1.bf16.xpose.msra.mxu0 0
        %1023 = vmatprep.subr.bf16.mxu0 0
        %1024 = vmatpush1.bf16.xpose.msra.mxu0 0
        %1025 = vmatprep.subr.bf16.mxu0 0
        %1026 = vmatpush1.bf16.xpose.msra.mxu0 0
        %1027 = vmatprep.subr.bf16.mxu0 0
        %1028 = vmatpush1.bf16.xpose.msra.mxu0 0
        %1029 = vmatprep.subr.bf16.mxu0 0
        %1030 = vmatpush1.bf16.xpose.msra.mxu0 0
        %1031 = vmatprep.subr.bf16.mxu0 0
        %1032 = vmatpush1.bf16.xpose.msra.mxu0 0
        %1033 = vmatprep.subr.bf16.mxu0 0
        %1034 = vmatpush1.bf16.xpose.msra.mxu0 0
        %1035 = vmatprep.subr.bf16.mxu0 0
        %1036 = vmatpush1.bf16.xpose.msra.mxu0 0
        %1037 = vmatprep.subr.bf16.mxu0 0
        %1038 = vmatpush1.bf16.xpose.msra.mxu0 0
        %1039 = vmatprep.subr.bf16.mxu0 0
        %1040 = vmatpush1.bf16.xpose.msra.mxu0 0
        %1041 = vmatprep.mubr.bf16.mxu0 0
        %1042 = vmatmul.mubr.bf16.gmra.mrb[0].mxu0 %v1004
        %v1043 = vpop.f32.mrb[0].mxu0
        %v1044 = vadd.f32 %v764, %v1043
        %v1045 = vpop.f32.mrb[0].mxu0
        %v1046 = vpop.f32.mrb[0].mxu0
        %v1047 = vpop.f32.mrb[0].mxu0
        %1048 = vdwg.mxu0
        %v1049 = vsel %vm769, %v1044, -inf
        %1050 = vmax.xlane.f32.xlu0 %v1049
        %v1051 = vpop.xlane.xlu0 %1050
        %v1052 = vsub.f32 %v1044, %v1051
        %v1053 = vmul.f32 %v1052, 1.442695
        %v1054 = vpow.pop %v1053
        %v1055 = vsel %vm769, %v1054, 0.0
        %1056 = vadd.xlane.f32.xlu0 %v1055
        %v1057 = vpop.xlane.xlu0 %1056
        %v1058 = vrcp.pop %v1057
        %v1059 = vmul.f32 %v1054, %v1058
        %v1060 = vpack.c.bf16 %v1059, %v1059
        %1061 = vrot.lane.b32.xlu0 %v758, 48
        %v1062 = vpop.permute.xlu0 %1061
        %v1064 = vsel %vm769, %v1060, 0
        %v1067 = vsel %vm833, %v1062, 0
        %1069 = vmatprep.subr.bf16.mxu0 0
        %1070 = vmatpush1.bf16.msra.mxu0 %v1067
        %1071 = vmatprep.subr.bf16.mxu0 0
        %1072 = vmatpush1.bf16.msra.mxu0 0
        %1073 = vmatprep.subr.bf16.mxu0 0
        %1074 = vmatpush1.bf16.msra.mxu0 0
        %1075 = vmatprep.subr.bf16.mxu0 0
        %1076 = vmatpush1.bf16.msra.mxu0 0
        %1077 = vmatprep.subr.bf16.mxu0 0
        %1078 = vmatpush1.bf16.msra.mxu0 0
        %1079 = vmatprep.subr.bf16.mxu0 0
        %1080 = vmatpush1.bf16.msra.mxu0 0
        %1081 = vmatprep.subr.bf16.mxu0 0
        %1082 = vmatpush1.bf16.msra.mxu0 0
        %1083 = vmatprep.subr.bf16.mxu0 0
        %1084 = vmatpush1.bf16.msra.mxu0 0
        %1085 = vmatprep.subr.bf16.mxu0 0
        %1086 = vmatpush1.bf16.msra.mxu0 0
        %1087 = vmatprep.subr.bf16.mxu0 0
        %1088 = vmatpush1.bf16.msra.mxu0 0
        %1089 = vmatprep.subr.bf16.mxu0 0
        %1090 = vmatpush1.bf16.msra.mxu0 0
        %1091 = vmatprep.subr.bf16.mxu0 0
        %1092 = vmatpush1.bf16.msra.mxu0 0
        %1093 = vmatprep.subr.bf16.mxu0 0
        %1094 = vmatpush1.bf16.msra.mxu0 0
        %1095 = vmatprep.subr.bf16.mxu0 0
        %1096 = vmatpush1.bf16.msra.mxu0 0
        %1097 = vmatprep.subr.bf16.mxu0 0
        %1098 = vmatpush1.bf16.msra.mxu0 0
        %1099 = vmatprep.subr.bf16.mxu0 0
        %1100 = vmatpush1.bf16.msra.mxu0 0
        %1101 = vmatprep.mubr.bf16.mxu0 0
        %1102 = vmatmul.mubr.bf16.gmra.mrb[0].mxu0 %v1064
        %v1103 = vpop.f32.mrb[0].mxu0
        %v1104 = vadd.f32 0.0, %v1103
        %v1105 = vpop.f32.mrb[0].mxu0
        %v1106 = vpop.f32.mrb[0].mxu0
        %v1107 = vpop.f32.mrb[0].mxu0
        %1108 = vdwg.mxu0
        %v1109 = vpack.c.bf16 %v1104, %v1104
        %v1111 = vunpack.c.l.b16 %v1109
        %v1112 = vpack.c.b16 %v1111, %v1111
        %1113 = vrot.lane.b32.xlu0 %v1112, 16
        %v1114 = vpop.permute.xlu0 %1113
        %vm1116 = vcmask 191616
        %1117 = vst.msk [vmem:[#allocation2] sm:$0xf] %vm1116, %v1114
        %1118 = vrot.lane.b32.xlu0 %v758, 104
        %v1119 = vpop.permute.xlu0 %1118
        %1120 = vrot.lane.b32.xlu0 %v758, 72
        %v1121 = vpop.permute.xlu0 %1120
        %v1123 = vsel %vm769, %v1119, 0
        %v1126 = vsel %vm769, %v1121, 0
        %1128 = vmatprep.subr.bf16.mxu0 0
        %1129 = vmatpush1.bf16.xpose.msra.mxu0 %v1126
        %1130 = vmatprep.subr.bf16.mxu0 0
        %1131 = vmatpush1.bf16.xpose.msra.mxu0 0
        %1132 = vmatprep.subr.bf16.mxu0 0
        %1133 = vmatpush1.bf16.xpose.msra.mxu0 0
        %1134 = vmatprep.subr.bf16.mxu0 0
        %1135 = vmatpush1.bf16.xpose.msra.mxu0 0
        %1136 = vmatprep.subr.bf16.mxu0 0
        %1137 = vmatpush1.bf16.xpose.msra.mxu0 0
        %1138 = vmatprep.subr.bf16.mxu0 0
        %1139 = vmatpush1.bf16.xpose.msra.mxu0 0
        %1140 = vmatprep.subr.bf16.mxu0 0
        %1141 = vmatpush1.bf16.xpose.msra.mxu0 0
        %1142 = vmatprep.subr.bf16.mxu0 0
        %1143 = vmatpush1.bf16.xpose.msra.mxu0 0
        %1144 = vmatprep.subr.bf16.mxu0 0
        %1145 = vmatpush1.bf16.xpose.msra.mxu0 0
        %1146 = vmatprep.subr.bf16.mxu0 0
        %1147 = vmatpush1.bf16.xpose.msra.mxu0 0
        %1148 = vmatprep.subr.bf16.mxu0 0
        %1149 = vmatpush1.bf16.xpose.msra.mxu0 0
        %1150 = vmatprep.subr.bf16.mxu0 0
        %1151 = vmatpush1.bf16.xpose.msra.mxu0 0
        %1152 = vmatprep.subr.bf16.mxu0 0
        %1153 = vmatpush1.bf16.xpose.msra.mxu0 0
        %1154 = vmatprep.subr.bf16.mxu0 0
        %1155 = vmatpush1.bf16.xpose.msra.mxu0 0
        %1156 = vmatprep.subr.bf16.mxu0 0
        %1157 = vmatpush1.bf16.xpose.msra.mxu0 0
        %1158 = vmatprep.subr.bf16.mxu0 0
        %1159 = vmatpush1.bf16.xpose.msra.mxu0 0
        %1160 = vmatprep.mubr.bf16.mxu0 0
        %1161 = vmatmul.mubr.bf16.gmra.mrb[0].mxu0 %v1123
        %v1162 = vpop.f32.mrb[0].mxu0
        %v1163 = vadd.f32 %v764, %v1162
        %v1164 = vpop.f32.mrb[0].mxu0
        %v1165 = vpop.f32.mrb[0].mxu0
        %v1166 = vpop.f32.mrb[0].mxu0
        %1167 = vdwg.mxu0
        %v1168 = vsel %vm769, %v1163, -inf
        %1169 = vmax.xlane.f32.xlu0 %v1168
        %v1170 = vpop.xlane.xlu0 %1169
        %v1171 = vsub.f32 %v1163, %v1170
        %v1172 = vmul.f32 %v1171, 1.442695
        %v1173 = vpow.pop %v1172
        %v1174 = vsel %vm769, %v1173, 0.0
        %1175 = vadd.xlane.f32.xlu0 %v1174
        %v1176 = vpop.xlane.xlu0 %1175
        %v1177 = vrcp.pop %v1176
        %v1178 = vmul.f32 %v1173, %v1177
        %v1179 = vpack.c.bf16 %v1178, %v1178
        %1180 = vrot.lane.b32.xlu0 %v758, 40
        %v1181 = vpop.permute.xlu0 %1180
        %v1183 = vsel %vm769, %v1179, 0
        %v1186 = vsel %vm833, %v1181, 0
        %1188 = vmatprep.subr.bf16.mxu0 0
        %1189 = vmatpush1.bf16.msra.mxu0 %v1186
        %1190 = vmatprep.subr.bf16.mxu0 0
        %1191 = vmatpush1.bf16.msra.mxu0 0
        %1192 = vmatprep.subr.bf16.mxu0 0
        %1193 = vmatpush1.bf16.msra.mxu0 0
        %1194 = vmatprep.subr.bf16.mxu0 0
        %1195 = vmatpush1.bf16.msra.mxu0 0
        %1196 = vmatprep.subr.bf16.mxu0 0
        %1197 = vmatpush1.bf16.msra.mxu0 0
        %1198 = vmatprep.subr.bf16.mxu0 0
        %1199 = vmatpush1.bf16.msra.mxu0 0
        %1200 = vmatprep.subr.bf16.mxu0 0
        %1201 = vmatpush1.bf16.msra.mxu0 0
        %1202 = vmatprep.subr.bf16.mxu0 0
        %1203 = vmatpush1.bf16.msra.mxu0 0
        %1204 = vmatprep.subr.bf16.mxu0 0
        %1205 = vmatpush1.bf16.msra.mxu0 0
        %1206 = vmatprep.subr.bf16.mxu0 0
        %1207 = vmatpush1.bf16.msra.mxu0 0
        %1208 = vmatprep.subr.bf16.mxu0 0
        %1209 = vmatpush1.bf16.msra.mxu0 0
        %1210 = vmatprep.subr.bf16.mxu0 0
        %1211 = vmatpush1.bf16.msra.mxu0 0
        %1212 = vmatprep.subr.bf16.mxu0 0
        %1213 = vmatpush1.bf16.msra.mxu0 0
        %1214 = vmatprep.subr.bf16.mxu0 0
        %1215 = vmatpush1.bf16.msra.mxu0 0
        %1216 = vmatprep.subr.bf16.mxu0 0
        %1217 = vmatpush1.bf16.msra.mxu0 0
        %1218 = vmatprep.subr.bf16.mxu0 0
        %1219 = vmatpush1.bf16.msra.mxu0 0
        %1220 = vmatprep.mubr.bf16.mxu0 0
        %1221 = vmatmul.mubr.bf16.gmra.mrb[0].mxu0 %v1183
        %v1222 = vpop.f32.mrb[0].mxu0
        %v1223 = vadd.f32 0.0, %v1222
        %v1224 = vpop.f32.mrb[0].mxu0
        %v1225 = vpop.f32.mrb[0].mxu0
        %v1226 = vpop.f32.mrb[0].mxu0
        %1227 = vdwg.mxu0
        %v1228 = vpack.c.bf16 %v1223, %v1223
        %v1230 = vunpack.c.l.b16 %v1228
        %v1231 = vpack.c.b16 %v1230, %v1230
        %1232 = vrot.lane.b32.xlu0 %v1231, 24
        %v1233 = vpop.permute.xlu0 %1232
        %vm1235 = vcmask 257216
        %1236 = vst.msk [vmem:[#allocation2] sm:$0xf] %vm1235, %v1233
        %v1237 = vld [vmem:[#allocation2] sm:$0xf]
        %v1238 = vld [vmem:[%s649] sm:$0xf]
        %v1239 = vld [vmem:[%s649 + $0x4] sm:$0xf]
        %v1240 = vld [vmem:[%s649 + $0x8] sm:$0xf]
        %v1241 = vld [vmem:[%s649 + $0xc] sm:$0xf]
        %v1242 = vld [vmem:[%s652] sm:$0x1]
        %v1244 = vlaneseq
        %v1245 = vshrl.u32 %v1244, 7
        %v1246 = vsub.s32 0, %v1245
        %v1247 = vrot.slane %v1242, %v1246
        %v1253 = vunpack.c.l.b16 %v1238
        %v1254 = vunpack.c.l.b16 %v1239
        %v1255 = vunpack.c.l.b16 %v1240
        %v1256 = vunpack.c.l.b16 %v1241
        %v1257 = vpack.c.b16 %v1254, %v1253
        %v1258 = vpack.c.b16 %v1256, %v1255
        %v1262 = vsel %vm714, %v1237, 0
        %1264 = vmatprep.subr.bf16.mxu0 0
        %1265 = vmatpush1.bf16.msra.mxu0 %v1257
        %1266 = vmatprep.subr.bf16.mxu0 0
        %1267 = vmatpush1.bf16.msra.mxu0 %v1258
        %1268 = vmatprep.subr.bf16.mxu0 0
        %1269 = vmatpush1.bf16.msra.mxu0 0
        %1270 = vmatprep.subr.bf16.mxu0 0
        %1271 = vmatpush1.bf16.msra.mxu0 0
        %1272 = vmatprep.subr.bf16.mxu0 0
        %1273 = vmatpush1.bf16.msra.mxu0 0
        %1274 = vmatprep.subr.bf16.mxu0 0
        %1275 = vmatpush1.bf16.msra.mxu0 0
        %1276 = vmatprep.subr.bf16.mxu0 0
        %1277 = vmatpush1.bf16.msra.mxu0 0
        %1278 = vmatprep.subr.bf16.mxu0 0
        %1279 = vmatpush1.bf16.msra.mxu0 0
        %1280 = vmatprep.subr.bf16.mxu0 0
        %1281 = vmatpush1.bf16.msra.mxu0 0
        %1282 = vmatprep.subr.bf16.mxu0 0
        %1283 = vmatpush1.bf16.msra.mxu0 0
        %1284 = vmatprep.subr.bf16.mxu0 0
        %1285 = vmatpush1.bf16.msra.mxu0 0
        %1286 = vmatprep.subr.bf16.mxu0 0
        %1287 = vmatpush1.bf16.msra.mxu0 0
        %1288 = vmatprep.subr.bf16.mxu0 0
        %1289 = vmatpush1.bf16.msra.mxu0 0
        %1290 = vmatprep.subr.bf16.mxu0 0
        %1291 = vmatpush1.bf16.msra.mxu0 0
        %1292 = vmatprep.subr.bf16.mxu0 0
        %1293 = vmatpush1.bf16.msra.mxu0 0
        %1294 = vmatprep.subr.bf16.mxu0 0
        %1295 = vmatpush1.bf16.msra.mxu0 0
        %1296 = vmatprep.mubr.bf16.mxu0 0
        %1297 = vmatmul.mubr.bf16.gmra.mrb[0].mxu0 %v1262
        %v1298 = vpop.f32.mrb[0].mxu0
        %v1299 = vadd.f32 %v1247, %v1298
        %v1300 = vpop.f32.mrb[0].mxu0
        %v1301 = vpop.f32.mrb[0].mxu0
        %v1302 = vpop.f32.mrb[0].mxu0
        %1303 = vdwg.mxu0
        %v1304 = vadd.f32 %v689, %v1299
        %v1305 = vsel %vm714, %v1304, 0.0
        %1306 = vadd.xlane.f32.xlu0 %v1305
        %v1307 = vpop.xlane.xlu0 %1306
        %v1308 = vrcp.pop 32.0
        %v1309 = vmul.f32 %v1307, %v1308
        %v1310 = vmul.f32 %v1304, %v1304
        %v1311 = vsel %vm714, %v1310, 0.0
        %1312 = vadd.xlane.f32.xlu0 %v1311
        %v1313 = vpop.xlane.xlu0 %1312
        %v1314 = vmul.f32 %v1313, %v1308
        %v1315 = vmul.f32 %v1309, %v1309
        %v1316 = vsub.f32 %v1314, %v1315
        %v1317 = vsub.f32 %v1304, %v1309
        %v1318 = vadd.f32 %v1316, 1e-05
        %v1319 = vrsqrt.pop %v1318
        %v1320 = vmul.f32 %v1317, %v1319
        %v1321 = vld [vmem:[%s655] sm:$0x1]
        %v1323 = vlaneseq
        %v1324 = vshrl.u32 %v1323, 7
        %v1325 = vsub.s32 0, %v1324
        %v1326 = vrot.slane %v1321, %v1325
        %v1328 = vmul.f32 %v1320, %v1326
        %v1329 = vld [vmem:[%s658] sm:$0x1]
        %v1331 = vlaneseq
        %v1332 = vshrl.u32 %v1331, 7
        %v1333 = vsub.s32 0, %v1332
        %v1334 = vrot.slane %v1329, %v1333
        %v1336 = vadd.f32 %v1328, %v1334
        %v1337 = vpack.c.bf16 %v1336, %v1336
        %v1338 = vld [vmem:[%s669] sm:$0xf]
        %v1339 = vld [vmem:[%s669 + $0x4] sm:$0xf]
        %v1340 = vld [vmem:[%s669 + $0x8] sm:$0xf]
        %v1341 = vld [vmem:[%s669 + $0xc] sm:$0xf]
        %v1342 = vld [vmem:[%s672] sm:$0x1]
        %v1344 = vlaneseq
        %v1345 = vshrl.u32 %v1344, 7
        %v1346 = vsub.s32 0, %v1345
        %v1347 = vrot.slane %v1342, %v1346
        %v1353 = vunpack.c.l.b16 %v1338
        %v1354 = vunpack.c.l.b16 %v1339
        %v1355 = vunpack.c.l.b16 %v1340
        %v1356 = vunpack.c.l.b16 %v1341
        %v1357 = vpack.c.b16 %v1354, %v1353
        %v1358 = vpack.c.b16 %v1356, %v1355
        %v1362 = vsel %vm714, %v1337, 0
        %1364 = vmatprep.subr.bf16.mxu0 0
        %1365 = vmatpush1.bf16.msra.mxu0 %v1357
        %1366 = vmatprep.subr.bf16.mxu0 0
        %1367 = vmatpush1.bf16.msra.mxu0 %v1358
        %1368 = vmatprep.subr.bf16.mxu0 0
        %1369 = vmatpush1.bf16.msra.mxu0 0
        %1370 = vmatprep.subr.bf16.mxu0 0
        %1371 = vmatpush1.bf16.msra.mxu0 0
        %1372 = vmatprep.subr.bf16.mxu0 0
        %1373 = vmatpush1.bf16.msra.mxu0 0
        %1374 = vmatprep.subr.bf16.mxu0 0
        %1375 = vmatpush1.bf16.msra.mxu0 0
        %1376 = vmatprep.subr.bf16.mxu0 0
        %1377 = vmatpush1.bf16.msra.mxu0 0
        %1378 = vmatprep.subr.bf16.mxu0 0
        %1379 = vmatpush1.bf16.msra.mxu0 0
        %1380 = vmatprep.subr.bf16.mxu0 0
        %1381 = vmatpush1.bf16.msra.mxu0 0
        %1382 = vmatprep.subr.bf16.mxu0 0
        %1383 = vmatpush1.bf16.msra.mxu0 0
        %1384 = vmatprep.subr.bf16.mxu0 0
        %1385 = vmatpush1.bf16.msra.mxu0 0
        %1386 = vmatprep.subr.bf16.mxu0 0
        %1387 = vmatpush1.bf16.msra.mxu0 0
        %1388 = vmatprep.subr.bf16.mxu0 0
        %1389 = vmatpush1.bf16.msra.mxu0 0
        %1390 = vmatprep.subr.bf16.mxu0 0
        %1391 = vmatpush1.bf16.msra.mxu0 0
        %1392 = vmatprep.subr.bf16.mxu0 0
        %1393 = vmatpush1.bf16.msra.mxu0 0
        %1394 = vmatprep.subr.bf16.mxu0 0
        %1395 = vmatpush1.bf16.msra.mxu0 0
        %1396 = vmatprep.mubr.bf16.mxu0 0
        %1397 = vmatmul.mubr.bf16.gmra.mrb[0].mxu0 %v1362
        %v1398 = vpop.f32.mrb[0].mxu0
        %v1399 = vadd.f32 %v1347, %v1398
        %v1400 = vpop.f32.mrb[0].mxu0
        %v1401 = vpop.f32.mrb[0].mxu0
        %v1402 = vpop.f32.mrb[0].mxu0
        %1403 = vdwg.mxu0
        %v1404 = vmax.f32 %v1399, 0.0
        %v1405 = vpack.c.bf16 %v1404, %v1404
        %v1406 = vld [vmem:[%s677] sm:$0xf]
        %v1407 = vld [vmem:[%s677 + $0x4] sm:$0xf]
        %v1408 = vld [vmem:[%s677 + $0x8] sm:$0xf]
        %v1409 = vld [vmem:[%s677 + $0xc] sm:$0xf]
        %v1410 = vld [vmem:[%s677 + $0x10] sm:$0xf]
        %v1411 = vld [vmem:[%s677 + $0x14] sm:$0xf]
        %v1412 = vld [vmem:[%s677 + $0x18] sm:$0xf]
        %v1413 = vld [vmem:[%s677 + $0x1c] sm:$0xf]
        %v1414 = vld [vmem:[%s680] sm:$0x1]
        %v1416 = vlaneseq
        %v1417 = vshrl.u32 %v1416, 7
        %v1418 = vsub.s32 0, %v1417
        %v1419 = vrot.slane %v1414, %v1418
        %v1429 = vunpack.c.l.b16 %v1406
        %v1430 = vunpack.c.l.b16 %v1407
        %v1431 = vunpack.c.l.b16 %v1408
        %v1432 = vunpack.c.l.b16 %v1409
        %v1433 = vunpack.c.l.b16 %v1410
        %v1434 = vunpack.c.l.b16 %v1411
        %v1435 = vunpack.c.l.b16 %v1412
        %v1436 = vunpack.c.l.b16 %v1413
        %v1437 = vpack.c.b16 %v1430, %v1429
        %v1438 = vpack.c.b16 %v1432, %v1431
        %v1439 = vpack.c.b16 %v1434, %v1433
        %v1440 = vpack.c.b16 %v1436, %v1435
        %vm1445 = vcmask 523264
        %v1447 = vsel %vm1445, %v1405, 0
        %1449 = vmatprep.subr.bf16.mxu0 0
        %1450 = vmatpush1.bf16.msra.mxu0 %v1437
        %1451 = vmatprep.subr.bf16.mxu0 0
        %1452 = vmatpush1.bf16.msra.mxu0 %v1438
        %1453 = vmatprep.subr.bf16.mxu0 0
        %1454 = vmatpush1.bf16.msra.mxu0 %v1439
        %1455 = vmatprep.subr.bf16.mxu0 0
        %1456 = vmatpush1.bf16.msra.mxu0 %v1440
        %1457 = vmatprep.subr.bf16.mxu0 0
        %1458 = vmatpush1.bf16.msra.mxu0 0
        %1459 = vmatprep.subr.bf16.mxu0 0
        %1460 = vmatpush1.bf16.msra.mxu0 0
        %1461 = vmatprep.subr.bf16.mxu0 0
        %1462 = vmatpush1.bf16.msra.mxu0 0
        %1463 = vmatprep.subr.bf16.mxu0 0
        %1464 = vmatpush1.bf16.msra.mxu0 0
        %1465 = vmatprep.subr.bf16.mxu0 0
        %1466 = vmatpush1.bf16.msra.mxu0 0
        %1467 = vmatprep.subr.bf16.mxu0 0
        %1468 = vmatpush1.bf16.msra.mxu0 0
        %1469 = vmatprep.subr.bf16.mxu0 0
        %1470 = vmatpush1.bf16.msra.mxu0 0
        %1471 = vmatprep.subr.bf16.mxu0 0
        %1472 = vmatpush1.bf16.msra.mxu0 0
        %1473 = vmatprep.subr.bf16.mxu0 0
        %1474 = vmatpush1.bf16.msra.mxu0 0
        %1475 = vmatprep.subr.bf16.mxu0 0
        %1476 = vmatpush1.bf16.msra.mxu0 0
        %1477 = vmatprep.subr.bf16.mxu0 0
        %1478 = vmatpush1.bf16.msra.mxu0 0
        %1479 = vmatprep.subr.bf16.mxu0 0
        %1480 = vmatpush1.bf16.msra.mxu0 0
        %1481 = vmatprep.mubr.bf16.mxu0 0
        %1482 = vmatmul.mubr.bf16.gmra.mrb[0].mxu0 %v1447
        %v1483 = vpop.f32.mrb[0].mxu0
        %v1484 = vadd.f32 %v1419, %v1483
        %v1485 = vpop.f32.mrb[0].mxu0
        %v1486 = vpop.f32.mrb[0].mxu0
        %v1487 = vpop.f32.mrb[0].mxu0
        %1488 = vdwg.mxu0
        %v1489 = vadd.f32 %v1336, %v1484
        %v1490 = vsel %vm714, %v1489, 0.0
        %1491 = vadd.xlane.f32.xlu0 %v1490
        %v1492 = vpop.xlane.xlu0 %1491
        %v1493 = vmul.f32 %v1492, %v1308
        %v1494 = vmul.f32 %v1489, %v1489
        %v1495 = vsel %vm714, %v1494, 0.0
        %1496 = vadd.xlane.f32.xlu0 %v1495
        %v1497 = vpop.xlane.xlu0 %1496
        %v1498 = vmul.f32 %v1497, %v1308
        %v1499 = vmul.f32 %v1493, %v1493
        %v1500 = vsub.f32 %v1498, %v1499
        %v1501 = vsub.f32 %v1489, %v1493
        %v1502 = vadd.f32 %v1500, 1e-05
        %v1503 = vrsqrt.pop %v1502
        %v1504 = vmul.f32 %v1501, %v1503
        %v1505 = vld [vmem:[%s661] sm:$0x1]
        %v1507 = vlaneseq
        %v1508 = vshrl.u32 %v1507, 7
        %v1509 = vsub.s32 0, %v1508
        %v1510 = vrot.slane %v1505, %v1509
        %v1512 = vmul.f32 %v1504, %v1510
        %v1513 = vld [vmem:[%s664] sm:$0x1]
        %v1515 = vlaneseq
        %v1516 = vshrl.u32 %v1515, 7
        %v1517 = vsub.s32 0, %v1516
        %v1518 = vrot.slane %v1513, %v1517
        %v1520 = vadd.f32 %v1512, %v1518
        %1521 = vst.msk [vmem:[%s629] sm:$0xff] %vm714, %v1520
        %s1522 = sand.u32 %s412, 1
        %s1523 = scalar_lea.sflag [#allocation4], %s1522
        %s1524 = sand.u32 %s412, 1
        %s1525 = smul.addr %s1524, 8
        %s1526 = scalar_lea.vmem [#allocation3], %s1525
        // Predicated region
        $region81: #{encoder_forward.1} parent=75 // pred_check
          %p1527 = pneg %p422
        $region82: #{encoder_forward.1} parent=75 // pred_check_branch
          %1529 = sbr.rel (%p1527) target = $region84
        $region83: #{encoder_forward.1} parent=75 // pred_region
          %s1531 = ssub.s32 128, 128
          %1532 = vsyncadd %s1523, %s1531
          %s1533 = smul.addr %s32, 128
          %s1534 = scalar_lea.hbm %s14, %s1533
          %s1536 = sshll.u32 %s1526, 4
          %s1537 = int_to_ptr.vmem [resolvable:$true] %s1536
          %1539 = dma.vmem_to_hbm [thread:$0]  %s1537, 128, %s1534, %s1523
        $region84: #{encoder_forward.1} parent=75 // pred_fallthru
          _
      $region76: #{encoder_forward.1} parent=5 // pred_fallthru
        _
      %p1540 = scmp.le.s32.totalorder 2, %s23
      // Predicated region
      $region85: #{encoder_forward.1} parent=5 // pred_check
        %p1541 = pneg %p1540
      $region86: #{encoder_forward.1} parent=5 // pred_check_branch
        %1543 = sbr.rel (%p1541) target = $region88
      $region87: #{encoder_forward.1} parent=5 // pred_region
        %s1544 = ssub.s32 %s23, 2
        // Predicated region
        $region89: #{encoder_forward.1} parent=87 // pred_check
          %p1545 = pneg %p428
        $region90: #{encoder_forward.1} parent=87 // pred_check_branch
          %1547 = sbr.rel (%p1545) target = $region92
        $region91: #{encoder_forward.1} parent=87 // pred_region
          %s1548 = sand.u32 %s413, 1
          %s1549 = scalar_lea.sflag [#allocation4], %s1548
          %s1550 = sand.u32 %s413, 1
          %s1551 = smul.addr %s1550, 8
          %s1552 = scalar_lea.vmem [#allocation3], %s1551
          %1553 = dma.done %s1549, 128
        $region92: #{encoder_forward.1} parent=87 // pred_fallthru
          _
      $region88: #{encoder_forward.1} parent=5 // pred_fallthru
        _
    $region6: #{encoder_forward.1} parent=1 // loop_footer
      %s27 = sadd.s32 1, %s23
    $region7: #{encoder_forward.1} parent=1 // loop_footer_branch
      %22 = sbr.rel target = $region3
    $region8: #{encoder_forward.1} parent=1 // loop_exit
      _
    %1554 = vsyncpa [#allocation4], 1
    %s1555 = scalar_lea.sflag [#allocation4], 1
    %1556 = vsyncpa %s1555, 1

</llo_original>
